<compile_context>
chip_gen: v7x
topology: tpu7x:2x2x1
jax: 0.10.0
libtpu: 0.0.40
codegen_flags: <defaults>
</compile_context>

<pallas_src>
import jax
import jax.numpy as jnp
import numpy as np
from jax.experimental import pallas as pl
from jax.experimental.pallas import tpu as pltpu


def gcn_kernel(abd_ref, x_ref, w1t_ref, w2t_ref, w3t_ref,
               scat_ref, mask_ref, woutt_ref, ssum_ref, bout_ref, out_ref):
    f32 = jnp.float32
    Abd = abd_ref[0]        # (TBN, TBN) block-diagonal adjacency for TB graphs
    H = x_ref[...]          # (TBN, Din)  node features, rows = (graph, node)

    def gc_layer(h, wt):
        # relu( (A @ h) @ W^T ), both as dense 2-D MXU matmuls with M = TBN rows.
        g = jnp.dot(Abd, h, preferred_element_type=f32)
        return jnp.maximum(jnp.dot(g, wt, preferred_element_type=f32), 0.0)

    H = gc_layer(H, w1t_ref[...])           # (TBN, Din)
    H = gc_layer(H, w2t_ref[...])           # (TBN, Dmid)
    H3 = gc_layer(H, w3t_ref[...])          # (TBN, Dout)

    # Output projection: out[b] = rowmajor_flatten(H3[graph b]) @ Wout^T + bout, done as
    # dense 2-D matmuls against wrapper-built constants (no per-row loop, no reshapes):
    #   tiled[r, n*Dout+d] = H3[r, d]           (lane-tile H3 via scat = [I I ... I])
    #   placed             = tiled * mask       (keep only block n == r mod N)
    #   partial[r, :]      = placed[r] @ Wout^T (per-(graph,node) contribution)
    #   acc[b, :]          = sum of graph b's N rows of partial (row-sum selector matmul)
    tiled = jnp.dot(H3, scat_ref[...], preferred_element_type=f32)          # (TBN, N*Dout)
    placed = tiled * mask_ref[...]                                          # (TBN, N*Dout)
    partial = jnp.dot(placed, woutt_ref[...], preferred_element_type=f32)   # (TBN, Dembed)
    acc = jnp.dot(ssum_ref[...], partial, preferred_element_type=f32)       # (TB, Dembed)
    acc = acc + bout_ref[...]

    # F.normalize(p=2, dim=-1): x / max(||x||_2, eps), eps = 1e-12
    norm = jnp.sqrt(jnp.sum(acc * acc, axis=-1, keepdims=True))
    out_ref[...] = acc / jnp.maximum(norm, 1e-12)


def gcn_forward(A, X, params, *, tb=16):
    """A: (B, N, N), X: (B, N, Din). Returns (B, Dembed), rows L2-normalized."""
    w1, w2, w3, wout, bout = params     # PyTorch Linear weights: (out_features, in_features)
    B, N, Din = X.shape
    Dmid = w2.shape[0]
    Dout = w3.shape[0]
    Dembed = wout.shape[0]
    assert wout.shape[1] == N * Dout, "out layer expects objects == dim_in"

    TB = tb                              # graphs per grid step (TB*N = 128 when N = 8)
    G = -(-B // TB)                      # number of grid steps
    B_pad = G * TB
    if B_pad != B:                       # pad with empty graphs; sliced off at the end
        A = jnp.pad(A, ((0, B_pad - B), (0, 0), (0, 0)))
        X = jnp.pad(X, ((0, B_pad - B), (0, 0), (0, 0)))
    TBN = TB * N

    # Block-diagonal adjacency per group of TB graphs: (G, TBN, TBN).
    eye_tb = jnp.eye(TB, dtype=jnp.float32)
    A_bd = jnp.einsum('gbij,bc->gbicj',
                      A.astype(jnp.float32).reshape(G, TB, N, N),
                      eye_tb).reshape(G, TBN, TBN)
    X_flat = X.astype(jnp.float32).reshape(B_pad * N, Din)

    # Pre-transpose weights so the kernel does plain row-major matmuls.
    w1t = w1.T.astype(jnp.float32)                  # (Din, Din)
    w2t = w2.T.astype(jnp.float32)                  # (Din, Dmid)
    w3t = w3.T.astype(jnp.float32)                  # (Dmid, Dout)
    woutt = wout.T.astype(jnp.float32)              # (N*Dout, Dembed)
    bout2d = bout.astype(jnp.float32).reshape(1, Dembed)

    # Constants implementing the per-graph row-major flatten as matmuls / masks.
    scat = jnp.tile(jnp.eye(Dout, dtype=jnp.float32), (1, N))              # (Dout, N*Dout)
    node = jnp.arange(TBN, dtype=jnp.int32) % N
    blk = jnp.arange(N * Dout, dtype=jnp.int32) // Dout
    mask = (blk[None, :] == node[:, None]).astype(jnp.float32)             # (TBN, N*Dout)
    grp = jnp.arange(TBN, dtype=jnp.int32) // N
    ssum = (jnp.arange(TB, dtype=jnp.int32)[:, None] == grp[None, :]
            ).astype(jnp.float32)                                          # (TB, TBN)

    out = pl.pallas_call(
        gcn_kernel,
        out_shape=jax.ShapeDtypeStruct((B_pad, Dembed), jnp.float32),
        grid_spec=pltpu.PrefetchScalarGridSpec(
            num_scalar_prefetch=0,
            grid=(G,),
            in_specs=[
                pl.BlockSpec((1, TBN, TBN), lambda g: (g, 0, 0)),      # block-diag A
                pl.BlockSpec((TBN, Din), lambda g: (g, 0)),            # X (flat rows)
                pl.BlockSpec((Din, Din), lambda g: (0, 0)),            # W1^T
                pl.BlockSpec((Din, Dmid), lambda g: (0, 0)),           # W2^T
                pl.BlockSpec((Dmid, Dout), lambda g: (0, 0)),          # W3^T
                pl.BlockSpec((Dout, N * Dout), lambda g: (0, 0)),      # scat
                pl.BlockSpec((TBN, N * Dout), lambda g: (0, 0)),       # mask
                pl.BlockSpec((N * Dout, Dembed), lambda g: (0, 0)),    # Wout^T
                pl.BlockSpec((TB, TBN), lambda g: (0, 0)),             # row-sum selector
                pl.BlockSpec((1, Dembed), lambda g: (0, 0)),           # bias
            ],
            out_specs=pl.BlockSpec((TB, Dembed), lambda g: (g, 0)),
        ),
        compiler_params=pltpu.CompilerParams(
            dimension_semantics=("parallel",)),
    )(A_bd, X_flat, w1t, w2t, w3t, scat, mask, woutt, ssum, bout2d)
    return out[:B]


def gcn_reference(A, X, params):
    """Pure-JAX reference mirroring the PyTorch forward exactly (f32)."""
    w1, w2, w3, wout, bout = params
    B, N, rep = X.shape
    with jax.default_matmul_precision("highest"):
        tmp = jnp.einsum('bij,bjk->bik', A, X).reshape(-1, rep)
        H = jax.nn.relu(tmp @ w1.T)
        H = H.reshape(B, -1, H.shape[-1])
        tmp = jnp.einsum('bij,bjk->bik', A, H).reshape(-1, H.shape[-1])
        H = jax.nn.relu(tmp @ w2.T)
        H = H.reshape(B, -1, H.shape[-1])
        tmp = jnp.einsum('bij,bjk->bik', A, H).reshape(-1, H.shape[-1])
        H = jax.nn.relu(tmp @ w3.T)
        H = H.reshape(B, -1)
        out = H @ wout.T + bout
        norm = jnp.sqrt(jnp.sum(out * out, axis=-1, keepdims=True))
        return out / jnp.maximum(norm, 1e-12)


if __name__ == "__main__":
    # Small shapes consistent with the module: objects must equal dim_in
    # (self.out has in_features = dim_out * dim_in).  batch=32 -> 2 even grid steps.
    batch, dim_in, dim_out, dim_embed = 32, 8, 8, 128
    objects = dim_in

    key = jax.random.PRNGKey(0)
    k_a, k_x, k1, k2, k3, k4, k5 = jax.random.split(key, 7)

    A = jax.random.uniform(k_a, (batch, objects, objects), jnp.float32)
    X = jax.random.normal(k_x, (batch, objects, dim_in), jnp.float32)

    # Deterministic parameter init (PyTorch Linear weight layout: (out, in)).
    def init(k, shape, fan_in):
        lim = 1.0 / np.sqrt(fan_in)
        return jax.random.uniform(k, shape, jnp.float32, -lim, lim)

    w1 = init(k1, (dim_in, dim_in), dim_in)
    w2 = init(k2, (dim_in // 2, dim_in), dim_in)
    w3 = init(k3, (dim_out, dim_in // 2), dim_in // 2)
    wout = init(k4, (dim_embed, dim_out * dim_in), dim_out * dim_in)
    bout = init(k5, (dim_embed,), dim_out * dim_in)
    params = (w1, w2, w3, wout, bout)

    out = jax.block_until_ready(gcn_forward(A, X, params))
    ref = gcn_reference(A, X, params)
    np.testing.assert_allclose(np.asarray(out), np.asarray(ref), rtol=2e-5, atol=2e-5)

    print("KERNEL_OK")
</pallas_src>

<mosaic_0001>
module attributes {stable_mosaic.version = 11 : i64} {
  func.func @gcn_kernel(%arg0: i32, %arg1: memref<1x128x128xf32, #tpu.memory_space<vmem>>, %arg2: memref<128x8xf32, #tpu.memory_space<vmem>>, %arg3: memref<8x8xf32, #tpu.memory_space<vmem>>, %arg4: memref<8x4xf32, #tpu.memory_space<vmem>>, %arg5: memref<4x8xf32, #tpu.memory_space<vmem>>, %arg6: memref<8x64xf32, #tpu.memory_space<vmem>>, %arg7: memref<128x64xf32, #tpu.memory_space<vmem>>, %arg8: memref<64x128xf32, #tpu.memory_space<vmem>>, %arg9: memref<16x128xf32, #tpu.memory_space<vmem>>, %arg10: memref<1x128xf32, #tpu.memory_space<vmem>>, %arg11: memref<16x128xf32, #tpu.memory_space<vmem>>) attributes {dimension_semantics = [#tpu.dimension_semantics<parallel>], iteration_bounds = array<i64: 2>, scalar_prefetch = 0 : i64, scratch_operands = 0 : i64, tpu.core_type = #tpu.core_type<tc>, window_params = [{transform_indices = @transform_0, window_bounds = array<i64: 1, 128, 128>}, {transform_indices = @transform_1, window_bounds = array<i64: 128, 8>}, {pipeline_mode = #tpu.pipeline_mode<synchronous>, transform_indices = @transform_2, window_bounds = array<i64: 8, 8>}, {pipeline_mode = #tpu.pipeline_mode<synchronous>, transform_indices = @transform_3, window_bounds = array<i64: 8, 4>}, {pipeline_mode = #tpu.pipeline_mode<synchronous>, transform_indices = @transform_4, window_bounds = array<i64: 4, 8>}, {pipeline_mode = #tpu.pipeline_mode<synchronous>, transform_indices = @transform_5, window_bounds = array<i64: 8, 64>}, {pipeline_mode = #tpu.pipeline_mode<synchronous>, transform_indices = @transform_6, window_bounds = array<i64: 128, 64>}, {pipeline_mode = #tpu.pipeline_mode<synchronous>, transform_indices = @transform_7, window_bounds = array<i64: 64, 128>}, {pipeline_mode = #tpu.pipeline_mode<synchronous>, transform_indices = @transform_8, window_bounds = array<i64: 16, 128>}, {pipeline_mode = #tpu.pipeline_mode<synchronous>, transform_indices = @transform_9, window_bounds = array<i64: 1, 128>}, {transform_indices = @transform_10, window_bounds = array<i64: 16, 128>}]} {
    %c0 = arith.constant 0 : index
    %c0_0 = arith.constant 0 : index
    %c0_1 = arith.constant 0 : index
    %0 = vector.load %arg1[%c0, %c0_0, %c0_1] : memref<1x128x128xf32, #tpu.memory_space<vmem>>, vector<1x128x128xf32>
    %1 = vector.shape_cast %0 : vector<1x128x128xf32> to vector<128x128xf32>
    %c0_2 = arith.constant 0 : index
    %c0_3 = arith.constant 0 : index
    %2 = vector.load %arg2[%c0_2, %c0_3] : memref<128x8xf32, #tpu.memory_space<vmem>>, vector<128x8xf32>
    %c0_4 = arith.constant 0 : index
    %c0_5 = arith.constant 0 : index
    %3 = vector.load %arg3[%c0_4, %c0_5] : memref<8x8xf32, #tpu.memory_space<vmem>>, vector<8x8xf32>
    %cst = arith.constant dense<0.000000e+00> : vector<128x8xf32>
    %4 = tpu.matmul %1, %2, %cst {dimension_numbers = #tpu.dot_dimension_numbers<[1], [0], [0], [1], [0, 0, 1, 1], [], []>} : vector<128x128xf32>, vector<128x8xf32>, vector<128x8xf32> -> vector<128x8xf32>
    %cst_6 = arith.constant dense<0.000000e+00> : vector<128x8xf32>
    %5 = tpu.matmul %4, %3, %cst_6 {dimension_numbers = #tpu.dot_dimension_numbers<[1], [0], [0], [1], [0, 0, 1, 1], [], []>} : vector<128x8xf32>, vector<8x8xf32>, vector<128x8xf32> -> vector<128x8xf32>
    %cst_7 = arith.constant 0.000000e+00 : f32
    %6 = vector.broadcast %cst_7 : f32 to vector<128x8xf32>
    %7 = arith.maximumf %5, %6 : vector<128x8xf32>
    %c0_8 = arith.constant 0 : index
    %c0_9 = arith.constant 0 : index
    %8 = vector.load %arg4[%c0_8, %c0_9] : memref<8x4xf32, #tpu.memory_space<vmem>>, vector<8x4xf32>
    %cst_10 = arith.constant dense<0.000000e+00> : vector<128x8xf32>
    %9 = tpu.matmul %1, %7, %cst_10 {dimension_numbers = #tpu.dot_dimension_numbers<[1], [0], [0], [1], [0, 0, 1, 1], [], []>} : vector<128x128xf32>, vector<128x8xf32>, vector<128x8xf32> -> vector<128x8xf32>
    %cst_11 = arith.constant dense<0.000000e+00> : vector<128x4xf32>
    %10 = tpu.matmul %9, %8, %cst_11 {dimension_numbers = #tpu.dot_dimension_numbers<[1], [0], [0], [1], [0, 0, 1, 1], [], []>} : vector<128x8xf32>, vector<8x4xf32>, vector<128x4xf32> -> vector<128x4xf32>
    %cst_12 = arith.constant 0.000000e+00 : f32
    %11 = vector.broadcast %cst_12 : f32 to vector<128x4xf32>
    %12 = arith.maximumf %10, %11 : vector<128x4xf32>
    %c0_13 = arith.constant 0 : index
    %c0_14 = arith.constant 0 : index
    %13 = vector.load %arg5[%c0_13, %c0_14] : memref<4x8xf32, #tpu.memory_space<vmem>>, vector<4x8xf32>
    %cst_15 = arith.constant dense<0.000000e+00> : vector<128x4xf32>
    %14 = tpu.matmul %1, %12, %cst_15 {dimension_numbers = #tpu.dot_dimension_numbers<[1], [0], [0], [1], [0, 0, 1, 1], [], []>} : vector<128x128xf32>, vector<128x4xf32>, vector<128x4xf32> -> vector<128x4xf32>
    %cst_16 = arith.constant dense<0.000000e+00> : vector<128x8xf32>
    %15 = tpu.matmul %14, %13, %cst_16 {dimension_numbers = #tpu.dot_dimension_numbers<[1], [0], [0], [1], [0, 0, 1, 1], [], []>} : vector<128x4xf32>, vector<4x8xf32>, vector<128x8xf32> -> vector<128x8xf32>
    %cst_17 = arith.constant 0.000000e+00 : f32
    %16 = vector.broadcast %cst_17 : f32 to vector<128x8xf32>
    %17 = arith.maximumf %15, %16 : vector<128x8xf32>
    %c0_18 = arith.constant 0 : index
    %c0_19 = arith.constant 0 : index
    %18 = vector.load %arg6[%c0_18, %c0_19] : memref<8x64xf32, #tpu.memory_space<vmem>>, vector<8x64xf32>
    %cst_20 = arith.constant dense<0.000000e+00> : vector<128x64xf32>
    %19 = tpu.matmul %17, %18, %cst_20 {dimension_numbers = #tpu.dot_dimension_numbers<[1], [0], [0], [1], [0, 0, 1, 1], [], []>} : vector<128x8xf32>, vector<8x64xf32>, vector<128x64xf32> -> vector<128x64xf32>
    %c0_21 = arith.constant 0 : index
    %c0_22 = arith.constant 0 : index
    %20 = vector.load %arg7[%c0_21, %c0_22] : memref<128x64xf32, #tpu.memory_space<vmem>>, vector<128x64xf32>
    %21 = arith.mulf %19, %20 : vector<128x64xf32>
    %c0_23 = arith.constant 0 : index
    %c0_24 = arith.constant 0 : index
    %22 = vector.load %arg8[%c0_23, %c0_24] : memref<64x128xf32, #tpu.memory_space<vmem>>, vector<64x128xf32>
    %cst_25 = arith.constant dense<0.000000e+00> : vector<128x128xf32>
    %23 = tpu.matmul %21, %22, %cst_25 {dimension_numbers = #tpu.dot_dimension_numbers<[1], [0], [0], [1], [0, 0, 1, 1], [], []>} : vector<128x64xf32>, vector<64x128xf32>, vector<128x128xf32> -> vector<128x128xf32>
    %c0_26 = arith.constant 0 : index
    %c0_27 = arith.constant 0 : index
    %24 = vector.load %arg9[%c0_26, %c0_27] : memref<16x128xf32, #tpu.memory_space<vmem>>, vector<16x128xf32>
    %cst_28 = arith.constant dense<0.000000e+00> : vector<16x128xf32>
    %25 = tpu.matmul %24, %23, %cst_28 {dimension_numbers = #tpu.dot_dimension_numbers<[1], [0], [0], [1], [0, 0, 1, 1], [], []>} : vector<16x128xf32>, vector<128x128xf32>, vector<16x128xf32> -> vector<16x128xf32>
    %c0_29 = arith.constant 0 : index
    %c0_30 = arith.constant 0 : index
    %26 = vector.load %arg10[%c0_29, %c0_30] : memref<1x128xf32, #tpu.memory_space<vmem>>, vector<1x128xf32>
    %27 = vector.broadcast %26 : vector<1x128xf32> to vector<16x128xf32>
    %28 = arith.addf %25, %27 : vector<16x128xf32>
    %29 = arith.mulf %28, %28 : vector<16x128xf32>
    %cst_31 = arith.constant dense<0.000000e+00> : vector<16xf32>
    %30 = vector.multi_reduction <add>, %29, %cst_31 [1] : vector<16x128xf32> to vector<16xf32>
    %31 = vector.shape_cast %30 : vector<16xf32> to vector<16x1xf32>
    %32 = math.sqrt %31 : vector<16x1xf32>
    %cst_32 = arith.constant 9.99999996E-13 : f32
    %33 = vector.broadcast %cst_32 : f32 to vector<16x1xf32>
    %34 = arith.maximumf %32, %33 : vector<16x1xf32>
    %35 = vector.broadcast %34 : vector<16x1xf32> to vector<16x128xf32>
    %36 = arith.divf %28, %35 : vector<16x128xf32>
    %c0_33 = arith.constant 0 : index
    %c0_34 = arith.constant 0 : index
    %37 = vector.load %arg11[%c0_33, %c0_34] : memref<16x128xf32, #tpu.memory_space<vmem>>, vector<16x128xf32>
    tpu.vector_store %arg11[%c0_33, %c0_34], %36 {strides = array<i32>} : memref<16x128xf32, #tpu.memory_space<vmem>>, vector<16x128xf32>,
    return
  }
  func.func @transform_0(%arg0: i32) -> (i32, i32, i32) {
    %c0_i32 = arith.constant 0 : i32
    %c0_i32_0 = arith.constant 0 : i32
    %c0_i32_1 = arith.constant 0 : i32
    return %arg0, %c0_i32, %c0_i32_0 : i32, i32, i32
  }
  func.func @transform_1(%arg0: i32) -> (i32, i32) {
    %c0_i32 = arith.constant 0 : i32
    %c0_i32_0 = arith.constant 0 : i32
    return %arg0, %c0_i32 : i32, i32
  }
  func.func @transform_2(%arg0: i32) -> (i32, i32) {
    %c0_i32 = arith.constant 0 : i32
    %c0_i32_0 = arith.constant 0 : i32
    %c0_i32_1 = arith.constant 0 : i32
    return %c0_i32, %c0_i32_0 : i32, i32
  }
  func.func @transform_3(%arg0: i32) -> (i32, i32) {
    %c0_i32 = arith.constant 0 : i32
    %c0_i32_0 = arith.constant 0 : i32
    %c0_i32_1 = arith.constant 0 : i32
    return %c0_i32, %c0_i32_0 : i32, i32
  }
  func.func @transform_4(%arg0: i32) -> (i32, i32) {
    %c0_i32 = arith.constant 0 : i32
    %c0_i32_0 = arith.constant 0 : i32
    %c0_i32_1 = arith.constant 0 : i32
    return %c0_i32, %c0_i32_0 : i32, i32
  }
  func.func @transform_5(%arg0: i32) -> (i32, i32) {
    %c0_i32 = arith.constant 0 : i32
    %c0_i32_0 = arith.constant 0 : i32
    %c0_i32_1 = arith.constant 0 : i32
    return %c0_i32, %c0_i32_0 : i32, i32
  }
  func.func @transform_6(%arg0: i32) -> (i32, i32) {
    %c0_i32 = arith.constant 0 : i32
    %c0_i32_0 = arith.constant 0 : i32
    %c0_i32_1 = arith.constant 0 : i32
    return %c0_i32, %c0_i32_0 : i32, i32
  }
  func.func @transform_7(%arg0: i32) -> (i32, i32) {
    %c0_i32 = arith.constant 0 : i32
    %c0_i32_0 = arith.constant 0 : i32
    %c0_i32_1 = arith.constant 0 : i32
    return %c0_i32, %c0_i32_0 : i32, i32
  }
  func.func @transform_8(%arg0: i32) -> (i32, i32) {
    %c0_i32 = arith.constant 0 : i32
    %c0_i32_0 = arith.constant 0 : i32
    %c0_i32_1 = arith.constant 0 : i32
    return %c0_i32, %c0_i32_0 : i32, i32
  }
  func.func @transform_9(%arg0: i32) -> (i32, i32) {
    %c0_i32 = arith.constant 0 : i32
    %c0_i32_0 = arith.constant 0 : i32
    %c0_i32_1 = arith.constant 0 : i32
    return %c0_i32, %c0_i32_0 : i32, i32
  }
  func.func @transform_10(%arg0: i32) -> (i32, i32) {
    %c0_i32 = arith.constant 0 : i32
    %c0_i32_0 = arith.constant 0 : i32
    return %arg0, %c0_i32 : i32, i32
  }
}

</mosaic_0001>

<llo_original>
// kernel: tpu_custom_call.1
$region0: #{tpu_custom_call.1}
  #allocation0 [shape = 'u32[]', space=smem, size = 0x4, offset = 0x4, fixed_abs, tag = 'smem constant byte address 0x4 - core index']
  #allocation1 [shape = 'u32[144,128]{1,0:T(1,128)}', space=vmem, size = 0x12000, scoped, tag = 'internal scratch']
  %s0 = inlined_call_operand.vmem [shape: f32[2,128,128], index: 0, kind: input, shape index: {}]
  %s1 = inlined_call_operand.vmem [shape: f32[256,8], index: 1, kind: input, shape index: {}]
  %s2 = inlined_call_operand.vmem [shape: f32[8,8], index: 2, kind: input, shape index: {}]
  %s3 = inlined_call_operand.vmem [shape: f32[8,4], index: 3, kind: input, shape index: {}]
  %s4 = inlined_call_operand.vmem [shape: f32[4,8], index: 4, kind: input, shape index: {}]
  %s5 = inlined_call_operand.vmem [shape: f32[8,64], index: 5, kind: input, shape index: {}]
  %s6 = inlined_call_operand.vmem [shape: f32[128,64], index: 6, kind: input, shape index: {}]
  %s7 = inlined_call_operand.vmem [shape: f32[64,128], index: 7, kind: input, shape index: {}]
  %s8 = inlined_call_operand.vmem [shape: f32[16,128], index: 8, kind: input, shape index: {}]
  %s9 = inlined_call_operand.vmem [shape: f32[1,128], index: 9, kind: input, shape index: {}]
  %s10 = inlined_call_operand.hbm [shape: f32[32,128], index: 10, kind: output, shape index: {}]
  %s11 = sld [smem:[#allocation0]]
  $region73: #{tpu_custom_call.1} parent=0
    _
  %s13 = ssub.s32 1, %s11
  %s14 = scalar_select 0, %s13, %s11
  $region1: #{tpu_custom_call.1} parent=0
    #allocation2 [shape = 'u8[16384]{0}', space=vmem, size = 0x4000, scoped, tag = 'output window, operand 0']
    #allocation3 [shape = 's32[2]{0}', space=sflag, size = 0x8, scoped, tag = 'scoped memory for tpu_custom_call.1']
    %15 = vsyncpa [#allocation3], 0
    %s16 = scalar_lea.sflag [#allocation3], 1
    %17 = vsyncpa %s16, 0
    loop: start=0, step=1, limit=4
    $region2: #{tpu_custom_call.1} parent=1 // loop_pre_header
      _
    $region3: #{tpu_custom_call.1} parent=1 // loop_header
      %s19 = sphi 0, %s23
      %p20 = scmp.ge.s32.totalorder %s19, 4
      %s29 = sphi 0, %s31
      %s32 = sphi 0, %s29
      %s33 = sphi 0, %s32
      %s49 = sphi 0, %s33
      %s55 = sphi 0, %s57
      %s58 = sphi 0, %s55
      %s59 = sphi 0, %s58
      %s75 = sphi 0, %s59
      %s79 = sphi 0, %s79
      %s81 = sphi 0, %s79
      %s82 = sphi 0, %s81
      %s96 = sphi 0, %s82
      %s100 = sphi 0, %s100
      %s102 = sphi 0, %s100
      %s103 = sphi 0, %s102
      %s117 = sphi 0, %s103
      %s121 = sphi 0, %s121
      %s123 = sphi 0, %s121
      %s124 = sphi 0, %s123
      %s138 = sphi 0, %s124
      %s142 = sphi 0, %s142
      %s144 = sphi 0, %s142
      %s145 = sphi 0, %s144
      %s159 = sphi 0, %s145
      %s163 = sphi 0, %s163
      %s165 = sphi 0, %s163
      %s166 = sphi 0, %s165
      %s180 = sphi 0, %s166
      %s184 = sphi 0, %s184
      %s186 = sphi 0, %s184
      %s187 = sphi 0, %s186
      %s201 = sphi 0, %s187
      %s205 = sphi 0, %s205
      %s207 = sphi 0, %s205
      %s208 = sphi 0, %s207
      %s222 = sphi 0, %s208
      %s226 = sphi 0, %s226
      %s228 = sphi 0, %s226
      %s229 = sphi 0, %s228
      %s243 = sphi 0, %s229
      %s249 = sphi 0, %s251
      %s252 = sphi 0, %s249
      %s253 = sphi 0, %s252
      %s269 = sphi 0, %s253
    $region4: #{tpu_custom_call.1} parent=1 // loop_header_branch
      %22 = sbr.rel (%p20) target = $region8
    $region5: #{tpu_custom_call.1} parent=1 // loop_body
      %s24 = ssub.s32 %s19, 1
      %s25 = ssub.s32 %s19, 2
      %s26 = sadd.s32 %s19, 1
      %s27 = ssub.s32 %s19, %s26
      %p28 = scmp.eq.s32.totalorder %s27, 0
      %s30 = sadd.s32 %s29, 1
      %s31 = scalar_select %p28, %s29, %s30
      %p34 = pneg %p28
      %p35 = scmp.eq.s32.totalorder %s19, 1
      %p36 = por %p34, %p35
      %p37 = scmp.ne.s32.totalorder %s29, %s32
      %p38 = scmp.eq.s32.totalorder %s19, 0
      %p39 = por %p37, %p38
      %p40 = scmp.ne.s32.totalorder %s29, %s32
      %p41 = scmp.eq.s32.totalorder %s24, 1
      %p42 = por %p40, %p41
      %p43 = scmp.ne.s32.totalorder %s32, %s33
      %p44 = scmp.eq.s32.totalorder %s24, 0
      %p45 = por %p43, %p44
      %p46 = scmp.ne.s32.totalorder %s32, %s33
      %p47 = scmp.eq.s32.totalorder %s25, 1
      %p48 = por %p46, %p47
      %p50 = scmp.ne.s32.totalorder %s33, %s49
      %p51 = scmp.eq.s32.totalorder %s25, 0
      %p52 = por %p50, %p51
      %s53 = ssub.s32 %s19, %s26
      %p54 = scmp.eq.s32.totalorder %s53, 0
      %s56 = sadd.s32 %s55, 1
      %s57 = scalar_select %p54, %s55, %s56
      %p60 = pneg %p54
      %p61 = scmp.eq.s32.totalorder %s19, 1
      %p62 = por %p60, %p61
      %p63 = scmp.ne.s32.totalorder %s55, %s58
      %p64 = scmp.eq.s32.totalorder %s19, 0
      %p65 = por %p63, %p64
      %p66 = scmp.ne.s32.totalorder %s55, %s58
      %p67 = scmp.eq.s32.totalorder %s24, 1
      %p68 = por %p66, %p67
      %p69 = scmp.ne.s32.totalorder %s58, %s59
      %p70 = scmp.eq.s32.totalorder %s24, 0
      %p71 = por %p69, %p70
      %p72 = scmp.ne.s32.totalorder %s58, %s59
      %p73 = scmp.eq.s32.totalorder %s25, 1
      %p74 = por %p72, %p73
      %p76 = scmp.ne.s32.totalorder %s59, %s75
      %p77 = scmp.eq.s32.totalorder %s25, 0
      %p78 = por %p76, %p77
      %s80 = sadd.s32 %s79, 1
      %p83 = scmp.eq.s32.totalorder %s19, 1
      %p84 = scmp.ne.s32.totalorder %s79, %s81
      %p85 = scmp.eq.s32.totalorder %s19, 0
      %p86 = por %p84, %p85
      %p87 = scmp.ne.s32.totalorder %s79, %s81
      %p88 = scmp.eq.s32.totalorder %s24, 1
      %p89 = por %p87, %p88
      %p90 = scmp.ne.s32.totalorder %s81, %s82
      %p91 = scmp.eq.s32.totalorder %s24, 0
      %p92 = por %p90, %p91
      %p93 = scmp.ne.s32.totalorder %s81, %s82
      %p94 = scmp.eq.s32.totalorder %s25, 1
      %p95 = por %p93, %p94
      %p97 = scmp.ne.s32.totalorder %s82, %s96
      %p98 = scmp.eq.s32.totalorder %s25, 0
      %p99 = por %p97, %p98
      %s101 = sadd.s32 %s100, 1
      %p104 = scmp.eq.s32.totalorder %s19, 1
      %p105 = scmp.ne.s32.totalorder %s100, %s102
      %p106 = scmp.eq.s32.totalorder %s19, 0
      %p107 = por %p105, %p106
      %p108 = scmp.ne.s32.totalorder %s100, %s102
      %p109 = scmp.eq.s32.totalorder %s24, 1
      %p110 = por %p108, %p109
      %p111 = scmp.ne.s32.totalorder %s102, %s103
      %p112 = scmp.eq.s32.totalorder %s24, 0
      %p113 = por %p111, %p112
      %p114 = scmp.ne.s32.totalorder %s102, %s103
      %p115 = scmp.eq.s32.totalorder %s25, 1
      %p116 = por %p114, %p115
      %p118 = scmp.ne.s32.totalorder %s103, %s117
      %p119 = scmp.eq.s32.totalorder %s25, 0
      %p120 = por %p118, %p119
      %s122 = sadd.s32 %s121, 1
      %p125 = scmp.eq.s32.totalorder %s19, 1
      %p126 = scmp.ne.s32.totalorder %s121, %s123
      %p127 = scmp.eq.s32.totalorder %s19, 0
      %p128 = por %p126, %p127
      %p129 = scmp.ne.s32.totalorder %s121, %s123
      %p130 = scmp.eq.s32.totalorder %s24, 1
      %p131 = por %p129, %p130
      %p132 = scmp.ne.s32.totalorder %s123, %s124
      %p133 = scmp.eq.s32.totalorder %s24, 0
      %p134 = por %p132, %p133
      %p135 = scmp.ne.s32.totalorder %s123, %s124
      %p136 = scmp.eq.s32.totalorder %s25, 1
      %p137 = por %p135, %p136
      %p139 = scmp.ne.s32.totalorder %s124, %s138
      %p140 = scmp.eq.s32.totalorder %s25, 0
      %p141 = por %p139, %p140
      %s143 = sadd.s32 %s142, 1
      %p146 = scmp.eq.s32.totalorder %s19, 1
      %p147 = scmp.ne.s32.totalorder %s142, %s144
      %p148 = scmp.eq.s32.totalorder %s19, 0
      %p149 = por %p147, %p148
      %p150 = scmp.ne.s32.totalorder %s142, %s144
      %p151 = scmp.eq.s32.totalorder %s24, 1
      %p152 = por %p150, %p151
      %p153 = scmp.ne.s32.totalorder %s144, %s145
      %p154 = scmp.eq.s32.totalorder %s24, 0
      %p155 = por %p153, %p154
      %p156 = scmp.ne.s32.totalorder %s144, %s145
      %p157 = scmp.eq.s32.totalorder %s25, 1
      %p158 = por %p156, %p157
      %p160 = scmp.ne.s32.totalorder %s145, %s159
      %p161 = scmp.eq.s32.totalorder %s25, 0
      %p162 = por %p160, %p161
      %s164 = sadd.s32 %s163, 1
      %p167 = scmp.eq.s32.totalorder %s19, 1
      %p168 = scmp.ne.s32.totalorder %s163, %s165
      %p169 = scmp.eq.s32.totalorder %s19, 0
      %p170 = por %p168, %p169
      %p171 = scmp.ne.s32.totalorder %s163, %s165
      %p172 = scmp.eq.s32.totalorder %s24, 1
      %p173 = por %p171, %p172
      %p174 = scmp.ne.s32.totalorder %s165, %s166
      %p175 = scmp.eq.s32.totalorder %s24, 0
      %p176 = por %p174, %p175
      %p177 = scmp.ne.s32.totalorder %s165, %s166
      %p178 = scmp.eq.s32.totalorder %s25, 1
      %p179 = por %p177, %p178
      %p181 = scmp.ne.s32.totalorder %s166, %s180
      %p182 = scmp.eq.s32.totalorder %s25, 0
      %p183 = por %p181, %p182
      %s185 = sadd.s32 %s184, 1
      %p188 = scmp.eq.s32.totalorder %s19, 1
      %p189 = scmp.ne.s32.totalorder %s184, %s186
      %p190 = scmp.eq.s32.totalorder %s19, 0
      %p191 = por %p189, %p190
      %p192 = scmp.ne.s32.totalorder %s184, %s186
      %p193 = scmp.eq.s32.totalorder %s24, 1
      %p194 = por %p192, %p193
      %p195 = scmp.ne.s32.totalorder %s186, %s187
      %p196 = scmp.eq.s32.totalorder %s24, 0
      %p197 = por %p195, %p196
      %p198 = scmp.ne.s32.totalorder %s186, %s187
      %p199 = scmp.eq.s32.totalorder %s25, 1
      %p200 = por %p198, %p199
      %p202 = scmp.ne.s32.totalorder %s187, %s201
      %p203 = scmp.eq.s32.totalorder %s25, 0
      %p204 = por %p202, %p203
      %s206 = sadd.s32 %s205, 1
      %p209 = scmp.eq.s32.totalorder %s19, 1
      %p210 = scmp.ne.s32.totalorder %s205, %s207
      %p211 = scmp.eq.s32.totalorder %s19, 0
      %p212 = por %p210, %p211
      %p213 = scmp.ne.s32.totalorder %s205, %s207
      %p214 = scmp.eq.s32.totalorder %s24, 1
      %p215 = por %p213, %p214
      %p216 = scmp.ne.s32.totalorder %s207, %s208
      %p217 = scmp.eq.s32.totalorder %s24, 0
      %p218 = por %p216, %p217
      %p219 = scmp.ne.s32.totalorder %s207, %s208
      %p220 = scmp.eq.s32.totalorder %s25, 1
      %p221 = por %p219, %p220
      %p223 = scmp.ne.s32.totalorder %s208, %s222
      %p224 = scmp.eq.s32.totalorder %s25, 0
      %p225 = por %p223, %p224
      %s227 = sadd.s32 %s226, 1
      %p230 = scmp.eq.s32.totalorder %s19, 1
      %p231 = scmp.ne.s32.totalorder %s226, %s228
      %p232 = scmp.eq.s32.totalorder %s19, 0
      %p233 = por %p231, %p232
      %p234 = scmp.ne.s32.totalorder %s226, %s228
      %p235 = scmp.eq.s32.totalorder %s24, 1
      %p236 = por %p234, %p235
      %p237 = scmp.ne.s32.totalorder %s228, %s229
      %p238 = scmp.eq.s32.totalorder %s24, 0
      %p239 = por %p237, %p238
      %p240 = scmp.ne.s32.totalorder %s228, %s229
      %p241 = scmp.eq.s32.totalorder %s25, 1
      %p242 = por %p240, %p241
      %p244 = scmp.ne.s32.totalorder %s229, %s243
      %p245 = scmp.eq.s32.totalorder %s25, 0
      %p246 = por %p244, %p245
      %s247 = ssub.s32 %s19, %s26
      %p248 = scmp.eq.s32.totalorder %s247, 0
      %s250 = sadd.s32 %s249, 1
      %s251 = scalar_select %p248, %s249, %s250
      %p254 = pneg %p248
      %p255 = scmp.eq.s32.totalorder %s19, 1
      %p256 = por %p254, %p255
      %p257 = scmp.ne.s32.totalorder %s249, %s252
      %p258 = scmp.eq.s32.totalorder %s19, 0
      %p259 = por %p257, %p258
      %p260 = scmp.ne.s32.totalorder %s249, %s252
      %p261 = scmp.eq.s32.totalorder %s24, 1
      %p262 = por %p260, %p261
      %p263 = scmp.ne.s32.totalorder %s252, %s253
      %p264 = scmp.eq.s32.totalorder %s24, 0
      %p265 = por %p263, %p264
      %p266 = scmp.ne.s32.totalorder %s252, %s253
      %p267 = scmp.eq.s32.totalorder %s25, 1
      %p268 = por %p266, %p267
      %p270 = scmp.ne.s32.totalorder %s253, %s269
      %p271 = scmp.eq.s32.totalorder %s25, 0
      %p272 = por %p270, %p271
      %p273 = scmp.le.s32.totalorder 1, %s19
      %p274 = scmp.lt.s32.totalorder %s19, 3
      %p275 = pnand %p273, %p274
      %p276 = pneg %p275
      // Predicated region
      $region9: #{tpu_custom_call.1} parent=5 // pred_check
        _
      $region10: #{tpu_custom_call.1} parent=5 // pred_check_branch
        %278 = sbr.rel (%p275) target = $region12
      $region11: #{tpu_custom_call.1} parent=5 // pred_region
        %s279 = ssub.s32 %s19, 1
        // Predicated region
        $region13: #{tpu_custom_call.1} parent=11 // pred_check
          %p280 = pneg %p92
        $region14: #{tpu_custom_call.1} parent=11 // pred_check_branch
          %282 = sbr.rel (%p280) target = $region16
        $region15: #{tpu_custom_call.1} parent=11 // pred_region
          _
        $region16: #{tpu_custom_call.1} parent=11 // pred_fallthru
          _
        // Predicated region
        $region17: #{tpu_custom_call.1} parent=11 // pred_check
          %p283 = pneg %p113
        $region18: #{tpu_custom_call.1} parent=11 // pred_check_branch
          %285 = sbr.rel (%p283) target = $region20
        $region19: #{tpu_custom_call.1} parent=11 // pred_region
          _
        $region20: #{tpu_custom_call.1} parent=11 // pred_fallthru
          _
        // Predicated region
        $region21: #{tpu_custom_call.1} parent=11 // pred_check
          %p286 = pneg %p134
        $region22: #{tpu_custom_call.1} parent=11 // pred_check_branch
          %288 = sbr.rel (%p286) target = $region24
        $region23: #{tpu_custom_call.1} parent=11 // pred_region
          _
        $region24: #{tpu_custom_call.1} parent=11 // pred_fallthru
          _
        // Predicated region
        $region25: #{tpu_custom_call.1} parent=11 // pred_check
          %p289 = pneg %p155
        $region26: #{tpu_custom_call.1} parent=11 // pred_check_branch
          %291 = sbr.rel (%p289) target = $region28
        $region27: #{tpu_custom_call.1} parent=11 // pred_region
          _
        $region28: #{tpu_custom_call.1} parent=11 // pred_fallthru
          _
        // Predicated region
        $region29: #{tpu_custom_call.1} parent=11 // pred_check
          %p292 = pneg %p176
        $region30: #{tpu_custom_call.1} parent=11 // pred_check_branch
          %294 = sbr.rel (%p292) target = $region32
        $region31: #{tpu_custom_call.1} parent=11 // pred_region
          _
        $region32: #{tpu_custom_call.1} parent=11 // pred_fallthru
          _
        // Predicated region
        $region33: #{tpu_custom_call.1} parent=11 // pred_check
          %p295 = pneg %p197
        $region34: #{tpu_custom_call.1} parent=11 // pred_check_branch
          %297 = sbr.rel (%p295) target = $region36
        $region35: #{tpu_custom_call.1} parent=11 // pred_region
          _
        $region36: #{tpu_custom_call.1} parent=11 // pred_fallthru
          _
        // Predicated region
        $region37: #{tpu_custom_call.1} parent=11 // pred_check
          %p298 = pneg %p218
        $region38: #{tpu_custom_call.1} parent=11 // pred_check_branch
          %300 = sbr.rel (%p298) target = $region40
        $region39: #{tpu_custom_call.1} parent=11 // pred_region
          _
        $region40: #{tpu_custom_call.1} parent=11 // pred_fallthru
          _
        // Predicated region
        $region41: #{tpu_custom_call.1} parent=11 // pred_check
          %p301 = pneg %p239
        $region42: #{tpu_custom_call.1} parent=11 // pred_check_branch
          %303 = sbr.rel (%p301) target = $region44
        $region43: #{tpu_custom_call.1} parent=11 // pred_region
          _
        $region44: #{tpu_custom_call.1} parent=11 // pred_fallthru
          _
      $region12: #{tpu_custom_call.1} parent=5 // pred_fallthru
        _
      %p304 = scmp.lt.s32.totalorder %s19, 2
      // Predicated region
      $region45: #{tpu_custom_call.1} parent=5 // pred_check
        %p305 = pneg %p304
      $region46: #{tpu_custom_call.1} parent=5 // pred_check_branch
        %307 = sbr.rel (%p305) target = $region48
      $region47: #{tpu_custom_call.1} parent=5 // pred_region
        // Predicated region
        $region49: #{tpu_custom_call.1} parent=47 // pred_check
          %p308 = pneg %p39
        $region50: #{tpu_custom_call.1} parent=47 // pred_check_branch
          %310 = sbr.rel (%p308) target = $region52
        $region51: #{tpu_custom_call.1} parent=47 // pred_region
          %p311 = scmp.lt.s32.totalorder %s19, 1
          %s312 = scalar_select %p311, %s19, 1
          %s313 = smul.addr %s312, 16
          %s314 = smul.addr %s313, 8
          %s315 = scalar_lea.vmem %s0, %s314
        $region52: #{tpu_custom_call.1} parent=47 // pred_fallthru
          _
        // Predicated region
        $region53: #{tpu_custom_call.1} parent=47 // pred_check
          %p316 = pneg %p65
        $region54: #{tpu_custom_call.1} parent=47 // pred_check_branch
          %318 = sbr.rel (%p316) target = $region56
        $region55: #{tpu_custom_call.1} parent=47 // pred_region
          %s319 = smul.u32 16, %s19
          %p320 = scmp.lt.s32.totalorder %s319, 31
          %s321 = scalar_select %p320, %s319, 31
          %s322 = smul.addr %s321, 8
          %s323 = scalar_lea.vmem %s1, %s322
          %s324 = smul.u32 16, %s19
        $region56: #{tpu_custom_call.1} parent=47 // pred_fallthru
          _
      $region48: #{tpu_custom_call.1} parent=5 // pred_fallthru
        _
      %p325 = scmp.le.s32.totalorder 1, %s19
      %p326 = scmp.lt.s32.totalorder %s19, 3
      %p327 = pnand %p325, %p326
      %p328 = pneg %p327
      // Predicated region
      $region57: #{tpu_custom_call.1} parent=5 // pred_check
        _
      $region58: #{tpu_custom_call.1} parent=5 // pred_check_branch
        %330 = sbr.rel (%p327) target = $region60
      $region59: #{tpu_custom_call.1} parent=5 // pred_region
        %s331 = ssub.s32 %s19, 1
        %p332 = scmp.lt.s32.totalorder %s24, 1
        %s333 = scalar_select %p332, %s24, 1
        %s334 = smul.addr %s333, 16
        %s335 = smul.addr %s334, 8
        %s336 = scalar_lea.vmem %s0, %s335
        %p337 = pneg %p45
        %p338 = pneg %p42
        %s339 = smul.u32 16, %s24
        %p340 = scmp.lt.s32.totalorder %s339, 31
        %s341 = scalar_select %p340, %s339, 31
        %s342 = smul.addr %s341, 8
        %s343 = scalar_lea.vmem %s1, %s342
        %p344 = pneg %p71
        %p345 = pneg %p68
        %p346 = pneg %p92
        %p347 = pneg %p89
        %p348 = pneg %p113
        %p349 = pneg %p110
        %p350 = pneg %p134
        %p351 = pneg %p131
        %p352 = pneg %p155
        %p353 = pneg %p152
        %p354 = pneg %p176
        %p355 = pneg %p173
        %p356 = pneg %p197
        %p357 = pneg %p194
        %p358 = pneg %p218
        %p359 = pneg %p215
        %p360 = pneg %p239
        %p361 = pneg %p236
        %p362 = pneg %p265
        %p363 = pneg %p262
        %s364 = sand.u32 %s252, 1
        %s365 = scalar_lea.sflag [#allocation3], %s364
        %s366 = sand.u32 %s252, 1
        %s367 = smul.addr %s366, 16
        %s368 = scalar_lea.vmem [#allocation2], %s367
        %p369 = scmp.lt.s32.totalorder %s24, 1
        %s370 = scalar_select %p369, %s24, 1
        %s371 = smul.addr %s370, 16
        %s372 = smul.addr %s371, 8
        %s373 = scalar_lea.vmem %s0, %s372
        %s374 = smul.u32 16, %s24
        %p375 = scmp.lt.s32.totalorder %s374, 31
        %s376 = scalar_select %p375, %s374, 31
        %s377 = smul.addr %s376, 8
        %s378 = scalar_lea.vmem %s1, %s377
        %s379 = smul.u32 16, %s24
        %s380 = smul.u32 2, %s24
        %v381 = vld [vmem:[%s373] sm:$0xff]
        %v382 = vld [vmem:[%s373 + $0x8] sm:$0xff]
        %v383 = vld [vmem:[%s373 + $0x10] sm:$0xff]
        %v384 = vld [vmem:[%s373 + $0x18] sm:$0xff]
        %v385 = vld [vmem:[%s373 + $0x20] sm:$0xff]
        %v386 = vld [vmem:[%s373 + $0x28] sm:$0xff]
        %v387 = vld [vmem:[%s373 + $0x30] sm:$0xff]
        %v388 = vld [vmem:[%s373 + $0x38] sm:$0xff]
        %v389 = vld [vmem:[%s373 + $0x40] sm:$0xff]
        %v390 = vld [vmem:[%s373 + $0x48] sm:$0xff]
        %v391 = vld [vmem:[%s373 + $0x50] sm:$0xff]
        %v392 = vld [vmem:[%s373 + $0x58] sm:$0xff]
        %v393 = vld [vmem:[%s373 + $0x60] sm:$0xff]
        %v394 = vld [vmem:[%s373 + $0x68] sm:$0xff]
        %v395 = vld [vmem:[%s373 + $0x70] sm:$0xff]
        %v396 = vld [vmem:[%s373 + $0x78] sm:$0xff]
        %v397 = vld [vmem:[%s378] sm:$0xff]
        %v398 = vld [vmem:[%s378 + $0x8] sm:$0xff]
        %v399 = vld [vmem:[%s378 + $0x10] sm:$0xff]
        %v400 = vld [vmem:[%s378 + $0x18] sm:$0xff]
        %v401 = vld [vmem:[%s378 + $0x20] sm:$0xff]
        %v402 = vld [vmem:[%s378 + $0x28] sm:$0xff]
        %v403 = vld [vmem:[%s378 + $0x30] sm:$0xff]
        %v404 = vld [vmem:[%s378 + $0x38] sm:$0xff]
        %v405 = vld [vmem:[%s378 + $0x40] sm:$0xff]
        %v406 = vld [vmem:[%s378 + $0x48] sm:$0xff]
        %v407 = vld [vmem:[%s378 + $0x50] sm:$0xff]
        %v408 = vld [vmem:[%s378 + $0x58] sm:$0xff]
        %v409 = vld [vmem:[%s378 + $0x60] sm:$0xff]
        %v410 = vld [vmem:[%s378 + $0x68] sm:$0xff]
        %v411 = vld [vmem:[%s378 + $0x70] sm:$0xff]
        %v412 = vld [vmem:[%s378 + $0x78] sm:$0xff]
        %v413 = vld [vmem:[%s2] sm:$0xff]
        %414 = vmatprep.subr.mxu0 0.0
        %415 = vmatpush1.msra.mxu0 %v397
        %416 = vmatprep.subr.mxu0 0.0
        %417 = vmatpush1.msra.mxu0 %v398
        %418 = vmatprep.subr.mxu0 0.0
        %419 = vmatpush1.msra.mxu0 %v399
        %420 = vmatprep.subr.mxu0 0.0
        %421 = vmatpush1.msra.mxu0 %v400
        %422 = vmatprep.subr.mxu0 0.0
        %423 = vmatpush1.msra.mxu0 %v401
        %424 = vmatprep.subr.mxu0 0.0
        %425 = vmatpush1.msra.mxu0 %v402
        %426 = vmatprep.subr.mxu0 0.0
        %427 = vmatpush1.msra.mxu0 %v403
        %428 = vmatprep.subr.mxu0 0.0
        %429 = vmatpush1.msra.mxu0 %v404
        %430 = vmatprep.subr.mxu0 0.0
        %431 = vmatpush1.msra.mxu0 %v405
        %432 = vmatprep.subr.mxu0 0.0
        %433 = vmatpush1.msra.mxu0 %v406
        %434 = vmatprep.subr.mxu0 0.0
        %435 = vmatpush1.msra.mxu0 %v407
        %436 = vmatprep.subr.mxu0 0.0
        %437 = vmatpush1.msra.mxu0 %v408
        %438 = vmatprep.subr.mxu0 0.0
        %439 = vmatpush1.msra.mxu0 %v409
        %440 = vmatprep.subr.mxu0 0.0
        %441 = vmatpush1.msra.mxu0 %v410
        %442 = vmatprep.subr.mxu0 0.0
        %443 = vmatpush1.msra.mxu0 %v411
        %444 = vmatprep.subr.mxu0 0.0
        %445 = vmatpush1.msra.mxu0 %v412
        %446 = vmatprep.subr.mxu0 0.0
        %447 = vmatpush1.msra.mxu0 0.0
        %448 = vmatprep.subr.mxu0 0.0
        %449 = vmatpush1.msra.mxu0 0.0
        %450 = vmatprep.subr.mxu0 0.0
        %451 = vmatpush1.msra.mxu0 0.0
        %452 = vmatprep.subr.mxu0 0.0
        %453 = vmatpush1.msra.mxu0 0.0
        %454 = vmatprep.subr.mxu0 0.0
        %455 = vmatpush1.msra.mxu0 0.0
        %456 = vmatprep.subr.mxu0 0.0
        %457 = vmatpush1.msra.mxu0 0.0
        %458 = vmatprep.subr.mxu0 0.0
        %459 = vmatpush1.msra.mxu0 0.0
        %460 = vmatprep.subr.mxu0 0.0
        %461 = vmatpush1.msra.mxu0 0.0
        %462 = vmatprep.subr.mxu0 0.0
        %463 = vmatpush1.msra.mxu0 0.0
        %464 = vmatprep.subr.mxu0 0.0
        %465 = vmatpush1.msra.mxu0 0.0
        %466 = vmatprep.subr.mxu0 0.0
        %467 = vmatpush1.msra.mxu0 0.0
        %468 = vmatprep.subr.mxu0 0.0
        %469 = vmatpush1.msra.mxu0 0.0
        %470 = vmatprep.subr.mxu0 0.0
        %471 = vmatpush1.msra.mxu0 0.0
        %472 = vmatprep.subr.mxu0 0.0
        %473 = vmatpush1.msra.mxu0 0.0
        %474 = vmatprep.subr.mxu0 0.0
        %475 = vmatpush1.msra.mxu0 0.0
        %476 = vmatprep.subr.mxu0 0.0
        %477 = vmatpush1.msra.mxu0 0.0
        %478 = vmatprep.mubr.f32.mxu0 0.0
        %479 = vmatmul.mubr.f32.gmra.mrb[0].mxu0 %v381
        %v480 = vpop.f32.mrb[0].mxu0
        %v481 = vadd.f32 0.0, %v480
        %v482 = vpop.f32.mrb[0].mxu0
        %483 = vmatprep.mubr.f32.mxu0 0.0
        %484 = vmatmul.mubr.f32.gmra.mrb[0].mxu0 %v382
        %v485 = vpop.f32.mrb[0].mxu0
        %v486 = vadd.f32 0.0, %v485
        %v487 = vpop.f32.mrb[0].mxu0
        %488 = vmatprep.mubr.f32.mxu0 0.0
        %489 = vmatmul.mubr.f32.gmra.mrb[0].mxu0 %v383
        %v490 = vpop.f32.mrb[0].mxu0
        %v491 = vadd.f32 0.0, %v490
        %v492 = vpop.f32.mrb[0].mxu0
        %493 = vmatprep.mubr.f32.mxu0 0.0
        %494 = vmatmul.mubr.f32.gmra.mrb[0].mxu0 %v384
        %v495 = vpop.f32.mrb[0].mxu0
        %v496 = vadd.f32 0.0, %v495
        %v497 = vpop.f32.mrb[0].mxu0
        %498 = vmatprep.mubr.f32.mxu0 0.0
        %499 = vmatmul.mubr.f32.gmra.mrb[0].mxu0 %v385
        %v500 = vpop.f32.mrb[0].mxu0
        %v501 = vadd.f32 0.0, %v500
        %v502 = vpop.f32.mrb[0].mxu0
        %503 = vmatprep.mubr.f32.mxu0 0.0
        %504 = vmatmul.mubr.f32.gmra.mrb[0].mxu0 %v386
        %v505 = vpop.f32.mrb[0].mxu0
        %v506 = vadd.f32 0.0, %v505
        %v507 = vpop.f32.mrb[0].mxu0
        %508 = vmatprep.mubr.f32.mxu0 0.0
        %509 = vmatmul.mubr.f32.gmra.mrb[0].mxu0 %v387
        %v510 = vpop.f32.mrb[0].mxu0
        %v511 = vadd.f32 0.0, %v510
        %v512 = vpop.f32.mrb[0].mxu0
        %513 = vmatprep.mubr.f32.mxu0 0.0
        %514 = vmatmul.mubr.f32.gmra.mrb[0].mxu0 %v388
        %v515 = vpop.f32.mrb[0].mxu0
        %v516 = vadd.f32 0.0, %v515
        %v517 = vpop.f32.mrb[0].mxu0
        %518 = vmatprep.mubr.f32.mxu0 0.0
        %519 = vmatmul.mubr.f32.gmra.mrb[0].mxu0 %v389
        %v520 = vpop.f32.mrb[0].mxu0
        %v521 = vadd.f32 0.0, %v520
        %v522 = vpop.f32.mrb[0].mxu0
        %523 = vmatprep.mubr.f32.mxu0 0.0
        %524 = vmatmul.mubr.f32.gmra.mrb[0].mxu0 %v390
        %v525 = vpop.f32.mrb[0].mxu0
        %v526 = vadd.f32 0.0, %v525
        %v527 = vpop.f32.mrb[0].mxu0
        %528 = vmatprep.mubr.f32.mxu0 0.0
        %529 = vmatmul.mubr.f32.gmra.mrb[0].mxu0 %v391
        %v530 = vpop.f32.mrb[0].mxu0
        %v531 = vadd.f32 0.0, %v530
        %v532 = vpop.f32.mrb[0].mxu0
        %533 = vmatprep.mubr.f32.mxu0 0.0
        %534 = vmatmul.mubr.f32.gmra.mrb[0].mxu0 %v392
        %v535 = vpop.f32.mrb[0].mxu0
        %v536 = vadd.f32 0.0, %v535
        %v537 = vpop.f32.mrb[0].mxu0
        %538 = vmatprep.mubr.f32.mxu0 0.0
        %539 = vmatmul.mubr.f32.gmra.mrb[0].mxu0 %v393
        %v540 = vpop.f32.mrb[0].mxu0
        %v541 = vadd.f32 0.0, %v540
        %v542 = vpop.f32.mrb[0].mxu0
        %543 = vmatprep.mubr.f32.mxu0 0.0
        %544 = vmatmul.mubr.f32.gmra.mrb[0].mxu0 %v394
        %v545 = vpop.f32.mrb[0].mxu0
        %v546 = vadd.f32 0.0, %v545
        %v547 = vpop.f32.mrb[0].mxu0
        %548 = vmatprep.mubr.f32.mxu0 0.0
        %549 = vmatmul.mubr.f32.gmra.mrb[0].mxu0 %v395
        %v550 = vpop.f32.mrb[0].mxu0
        %v551 = vadd.f32 0.0, %v550
        %v552 = vpop.f32.mrb[0].mxu0
        %553 = vmatprep.mubr.f32.mxu0 0.0
        %554 = vmatmul.mubr.f32.gmra.mrb[0].mxu0 %v396
        %v555 = vpop.f32.mrb[0].mxu0
        %v556 = vadd.f32 0.0, %v555
        %v557 = vpop.f32.mrb[0].mxu0
        %558 = vdwg.mxu0
        %vm559 = vcmask 64512
        %v561 = vsel %vm559, %v481, 0
        %v564 = vsel %vm559, %v486, 0
        %v567 = vsel %vm559, %v491, 0
        %v570 = vsel %vm559, %v496, 0
        %v573 = vsel %vm559, %v501, 0
        %v576 = vsel %vm559, %v506, 0
        %v579 = vsel %vm559, %v511, 0
        %v582 = vsel %vm559, %v516, 0
        %v585 = vsel %vm559, %v521, 0
        %v588 = vsel %vm559, %v526, 0
        %v591 = vsel %vm559, %v531, 0
        %v594 = vsel %vm559, %v536, 0
        %v597 = vsel %vm559, %v541, 0
        %v600 = vsel %vm559, %v546, 0
        %v603 = vsel %vm559, %v551, 0
        %v606 = vsel %vm559, %v556, 0
        %608 = vmatprep.subr.mxu0 0.0
        %609 = vmatpush1.msra.mxu0 %v413
        %610 = vmatprep.subr.mxu0 0.0
        %611 = vmatpush1.msra.mxu0 0.0
        %612 = vmatprep.subr.mxu0 0.0
        %613 = vmatpush1.msra.mxu0 0.0
        %614 = vmatprep.subr.mxu0 0.0
        %615 = vmatpush1.msra.mxu0 0.0
        %616 = vmatprep.subr.mxu0 0.0
        %617 = vmatpush1.msra.mxu0 0.0
        %618 = vmatprep.subr.mxu0 0.0
        %619 = vmatpush1.msra.mxu0 0.0
        %620 = vmatprep.subr.mxu0 0.0
        %621 = vmatpush1.msra.mxu0 0.0
        %622 = vmatprep.subr.mxu0 0.0
        %623 = vmatpush1.msra.mxu0 0.0
        %624 = vmatprep.subr.mxu0 0.0
        %625 = vmatpush1.msra.mxu0 0.0
        %626 = vmatprep.subr.mxu0 0.0
        %627 = vmatpush1.msra.mxu0 0.0
        %628 = vmatprep.subr.mxu0 0.0
        %629 = vmatpush1.msra.mxu0 0.0
        %630 = vmatprep.subr.mxu0 0.0
        %631 = vmatpush1.msra.mxu0 0.0
        %632 = vmatprep.subr.mxu0 0.0
        %633 = vmatpush1.msra.mxu0 0.0
        %634 = vmatprep.subr.mxu0 0.0
        %635 = vmatpush1.msra.mxu0 0.0
        %636 = vmatprep.subr.mxu0 0.0
        %637 = vmatpush1.msra.mxu0 0.0
        %638 = vmatprep.subr.mxu0 0.0
        %639 = vmatpush1.msra.mxu0 0.0
        %640 = vmatprep.subr.mxu0 0.0
        %641 = vmatpush1.msra.mxu0 0.0
        %642 = vmatprep.subr.mxu0 0.0
        %643 = vmatpush1.msra.mxu0 0.0
        %644 = vmatprep.subr.mxu0 0.0
        %645 = vmatpush1.msra.mxu0 0.0
        %646 = vmatprep.subr.mxu0 0.0
        %647 = vmatpush1.msra.mxu0 0.0
        %648 = vmatprep.subr.mxu0 0.0
        %649 = vmatpush1.msra.mxu0 0.0
        %650 = vmatprep.subr.mxu0 0.0
        %651 = vmatpush1.msra.mxu0 0.0
        %652 = vmatprep.subr.mxu0 0.0
        %653 = vmatpush1.msra.mxu0 0.0
        %654 = vmatprep.subr.mxu0 0.0
        %655 = vmatpush1.msra.mxu0 0.0
        %656 = vmatprep.subr.mxu0 0.0
        %657 = vmatpush1.msra.mxu0 0.0
        %658 = vmatprep.subr.mxu0 0.0
        %659 = vmatpush1.msra.mxu0 0.0
        %660 = vmatprep.subr.mxu0 0.0
        %661 = vmatpush1.msra.mxu0 0.0
        %662 = vmatprep.subr.mxu0 0.0
        %663 = vmatpush1.msra.mxu0 0.0
        %664 = vmatprep.subr.mxu0 0.0
        %665 = vmatpush1.msra.mxu0 0.0
        %666 = vmatprep.subr.mxu0 0.0
        %667 = vmatpush1.msra.mxu0 0.0
        %668 = vmatprep.subr.mxu0 0.0
        %669 = vmatpush1.msra.mxu0 0.0
        %670 = vmatprep.subr.mxu0 0.0
        %671 = vmatpush1.msra.mxu0 0.0
        %672 = vmatprep.mubr.f32.mxu0 0.0
        %673 = vmatmul.mubr.f32.gmra.mrb[0].mxu0 %v561
        %v674 = vpop.f32.mrb[0].mxu0
        %v675 = vadd.f32 0.0, %v674
        %v676 = vpop.f32.mrb[0].mxu0
        %677 = vmatprep.mubr.f32.mxu0 0.0
        %678 = vmatmul.mubr.f32.gmra.mrb[0].mxu0 %v564
        %v679 = vpop.f32.mrb[0].mxu0
        %v680 = vadd.f32 0.0, %v679
        %v681 = vpop.f32.mrb[0].mxu0
        %682 = vmatprep.mubr.f32.mxu0 0.0
        %683 = vmatmul.mubr.f32.gmra.mrb[0].mxu0 %v567
        %v684 = vpop.f32.mrb[0].mxu0
        %v685 = vadd.f32 0.0, %v684
        %v686 = vpop.f32.mrb[0].mxu0
        %687 = vmatprep.mubr.f32.mxu0 0.0
        %688 = vmatmul.mubr.f32.gmra.mrb[0].mxu0 %v570
        %v689 = vpop.f32.mrb[0].mxu0
        %v690 = vadd.f32 0.0, %v689
        %v691 = vpop.f32.mrb[0].mxu0
        %692 = vmatprep.mubr.f32.mxu0 0.0
        %693 = vmatmul.mubr.f32.gmra.mrb[0].mxu0 %v573
        %v694 = vpop.f32.mrb[0].mxu0
        %v695 = vadd.f32 0.0, %v694
        %v696 = vpop.f32.mrb[0].mxu0
        %697 = vmatprep.mubr.f32.mxu0 0.0
        %698 = vmatmul.mubr.f32.gmra.mrb[0].mxu0 %v576
        %v699 = vpop.f32.mrb[0].mxu0
        %v700 = vadd.f32 0.0, %v699
        %v701 = vpop.f32.mrb[0].mxu0
        %702 = vmatprep.mubr.f32.mxu0 0.0
        %703 = vmatmul.mubr.f32.gmra.mrb[0].mxu0 %v579
        %v704 = vpop.f32.mrb[0].mxu0
        %v705 = vadd.f32 0.0, %v704
        %v706 = vpop.f32.mrb[0].mxu0
        %707 = vmatprep.mubr.f32.mxu0 0.0
        %708 = vmatmul.mubr.f32.gmra.mrb[0].mxu0 %v582
        %v709 = vpop.f32.mrb[0].mxu0
        %v710 = vadd.f32 0.0, %v709
        %v711 = vpop.f32.mrb[0].mxu0
        %712 = vmatprep.mubr.f32.mxu0 0.0
        %713 = vmatmul.mubr.f32.gmra.mrb[0].mxu0 %v585
        %v714 = vpop.f32.mrb[0].mxu0
        %v715 = vadd.f32 0.0, %v714
        %v716 = vpop.f32.mrb[0].mxu0
        %717 = vmatprep.mubr.f32.mxu0 0.0
        %718 = vmatmul.mubr.f32.gmra.mrb[0].mxu0 %v588
        %v719 = vpop.f32.mrb[0].mxu0
        %v720 = vadd.f32 0.0, %v719
        %v721 = vpop.f32.mrb[0].mxu0
        %722 = vmatprep.mubr.f32.mxu0 0.0
        %723 = vmatmul.mubr.f32.gmra.mrb[0].mxu0 %v591
        %v724 = vpop.f32.mrb[0].mxu0
        %v725 = vadd.f32 0.0, %v724
        %v726 = vpop.f32.mrb[0].mxu0
        %727 = vmatprep.mubr.f32.mxu0 0.0
        %728 = vmatmul.mubr.f32.gmra.mrb[0].mxu0 %v594
        %v729 = vpop.f32.mrb[0].mxu0
        %v730 = vadd.f32 0.0, %v729
        %v731 = vpop.f32.mrb[0].mxu0
        %732 = vmatprep.mubr.f32.mxu0 0.0
        %733 = vmatmul.mubr.f32.gmra.mrb[0].mxu0 %v597
        %v734 = vpop.f32.mrb[0].mxu0
        %v735 = vadd.f32 0.0, %v734
        %v736 = vpop.f32.mrb[0].mxu0
        %737 = vmatprep.mubr.f32.mxu0 0.0
        %738 = vmatmul.mubr.f32.gmra.mrb[0].mxu0 %v600
        %v739 = vpop.f32.mrb[0].mxu0
        %v740 = vadd.f32 0.0, %v739
        %v741 = vpop.f32.mrb[0].mxu0
        %742 = vmatprep.mubr.f32.mxu0 0.0
        %743 = vmatmul.mubr.f32.gmra.mrb[0].mxu0 %v603
        %v744 = vpop.f32.mrb[0].mxu0
        %v745 = vadd.f32 0.0, %v744
        %v746 = vpop.f32.mrb[0].mxu0
        %747 = vmatprep.mubr.f32.mxu0 0.0
        %748 = vmatmul.mubr.f32.gmra.mrb[0].mxu0 %v606
        %v749 = vpop.f32.mrb[0].mxu0
        %v750 = vadd.f32 0.0, %v749
        %v751 = vpop.f32.mrb[0].mxu0
        %752 = vdwg.mxu0
        %v753 = vmax.f32 %v675, 0.0
        %v754 = vmax.f32 %v680, 0.0
        %v755 = vmax.f32 %v685, 0.0
        %v756 = vmax.f32 %v690, 0.0
        %v757 = vmax.f32 %v695, 0.0
        %v758 = vmax.f32 %v700, 0.0
        %v759 = vmax.f32 %v705, 0.0
        %v760 = vmax.f32 %v710, 0.0
        %v761 = vmax.f32 %v715, 0.0
        %v762 = vmax.f32 %v720, 0.0
        %v763 = vmax.f32 %v725, 0.0
        %v764 = vmax.f32 %v730, 0.0
        %v765 = vmax.f32 %v735, 0.0
        %v766 = vmax.f32 %v740, 0.0
        %v767 = vmax.f32 %v745, 0.0
        %v768 = vmax.f32 %v750, 0.0
        %v769 = vld [vmem:[%s3] sm:$0xff]
        %770 = vmatprep.subr.mxu0 0.0
        %771 = vmatpush1.msra.mxu0 %v753
        %772 = vmatprep.subr.mxu0 0.0
        %773 = vmatpush1.msra.mxu0 %v754
        %774 = vmatprep.subr.mxu0 0.0
        %775 = vmatpush1.msra.mxu0 %v755
        %776 = vmatprep.subr.mxu0 0.0
        %777 = vmatpush1.msra.mxu0 %v756
        %778 = vmatprep.subr.mxu0 0.0
        %779 = vmatpush1.msra.mxu0 %v757
        %780 = vmatprep.subr.mxu0 0.0
        %781 = vmatpush1.msra.mxu0 %v758
        %782 = vmatprep.subr.mxu0 0.0
        %783 = vmatpush1.msra.mxu0 %v759
        %784 = vmatprep.subr.mxu0 0.0
        %785 = vmatpush1.msra.mxu0 %v760
        %786 = vmatprep.subr.mxu0 0.0
        %787 = vmatpush1.msra.mxu0 %v761
        %788 = vmatprep.subr.mxu0 0.0
        %789 = vmatpush1.msra.mxu0 %v762
        %790 = vmatprep.subr.mxu0 0.0
        %791 = vmatpush1.msra.mxu0 %v763
        %792 = vmatprep.subr.mxu0 0.0
        %793 = vmatpush1.msra.mxu0 %v764
        %794 = vmatprep.subr.mxu0 0.0
        %795 = vmatpush1.msra.mxu0 %v765
        %796 = vmatprep.subr.mxu0 0.0
        %797 = vmatpush1.msra.mxu0 %v766
        %798 = vmatprep.subr.mxu0 0.0
        %799 = vmatpush1.msra.mxu0 %v767
        %800 = vmatprep.subr.mxu0 0.0
        %801 = vmatpush1.msra.mxu0 %v768
        %802 = vmatprep.subr.mxu0 0.0
        %803 = vmatpush1.msra.mxu0 0.0
        %804 = vmatprep.subr.mxu0 0.0
        %805 = vmatpush1.msra.mxu0 0.0
        %806 = vmatprep.subr.mxu0 0.0
        %807 = vmatpush1.msra.mxu0 0.0
        %808 = vmatprep.subr.mxu0 0.0
        %809 = vmatpush1.msra.mxu0 0.0
        %810 = vmatprep.subr.mxu0 0.0
        %811 = vmatpush1.msra.mxu0 0.0
        %812 = vmatprep.subr.mxu0 0.0
        %813 = vmatpush1.msra.mxu0 0.0
        %814 = vmatprep.subr.mxu0 0.0
        %815 = vmatpush1.msra.mxu0 0.0
        %816 = vmatprep.subr.mxu0 0.0
        %817 = vmatpush1.msra.mxu0 0.0
        %818 = vmatprep.subr.mxu0 0.0
        %819 = vmatpush1.msra.mxu0 0.0
        %820 = vmatprep.subr.mxu0 0.0
        %821 = vmatpush1.msra.mxu0 0.0
        %822 = vmatprep.subr.mxu0 0.0
        %823 = vmatpush1.msra.mxu0 0.0
        %824 = vmatprep.subr.mxu0 0.0
        %825 = vmatpush1.msra.mxu0 0.0
        %826 = vmatprep.subr.mxu0 0.0
        %827 = vmatpush1.msra.mxu0 0.0
        %828 = vmatprep.subr.mxu0 0.0
        %829 = vmatpush1.msra.mxu0 0.0
        %830 = vmatprep.subr.mxu0 0.0
        %831 = vmatpush1.msra.mxu0 0.0
        %832 = vmatprep.subr.mxu0 0.0
        %833 = vmatpush1.msra.mxu0 0.0
        %834 = vmatprep.mubr.f32.mxu0 0.0
        %835 = vmatmul.mubr.f32.gmra.mrb[0].mxu0 %v381
        %v836 = vpop.f32.mrb[0].mxu0
        %v837 = vadd.f32 0.0, %v836
        %v838 = vpop.f32.mrb[0].mxu0
        %839 = vmatprep.mubr.f32.mxu0 0.0
        %840 = vmatmul.mubr.f32.gmra.mrb[0].mxu0 %v382
        %v841 = vpop.f32.mrb[0].mxu0
        %v842 = vadd.f32 0.0, %v841
        %v843 = vpop.f32.mrb[0].mxu0
        %844 = vmatprep.mubr.f32.mxu0 0.0
        %845 = vmatmul.mubr.f32.gmra.mrb[0].mxu0 %v383
        %v846 = vpop.f32.mrb[0].mxu0
        %v847 = vadd.f32 0.0, %v846
        %v848 = vpop.f32.mrb[0].mxu0
        %849 = vmatprep.mubr.f32.mxu0 0.0
        %850 = vmatmul.mubr.f32.gmra.mrb[0].mxu0 %v384
        %v851 = vpop.f32.mrb[0].mxu0
        %v852 = vadd.f32 0.0, %v851
        %v853 = vpop.f32.mrb[0].mxu0
        %854 = vmatprep.mubr.f32.mxu0 0.0
        %855 = vmatmul.mubr.f32.gmra.mrb[0].mxu0 %v385
        %v856 = vpop.f32.mrb[0].mxu0
        %v857 = vadd.f32 0.0, %v856
        %v858 = vpop.f32.mrb[0].mxu0
        %859 = vmatprep.mubr.f32.mxu0 0.0
        %860 = vmatmul.mubr.f32.gmra.mrb[0].mxu0 %v386
        %v861 = vpop.f32.mrb[0].mxu0
        %v862 = vadd.f32 0.0, %v861
        %v863 = vpop.f32.mrb[0].mxu0
        %864 = vmatprep.mubr.f32.mxu0 0.0
        %865 = vmatmul.mubr.f32.gmra.mrb[0].mxu0 %v387
        %v866 = vpop.f32.mrb[0].mxu0
        %v867 = vadd.f32 0.0, %v866
        %v868 = vpop.f32.mrb[0].mxu0
        %869 = vmatprep.mubr.f32.mxu0 0.0
        %870 = vmatmul.mubr.f32.gmra.mrb[0].mxu0 %v388
        %v871 = vpop.f32.mrb[0].mxu0
        %v872 = vadd.f32 0.0, %v871
        %v873 = vpop.f32.mrb[0].mxu0
        %874 = vmatprep.mubr.f32.mxu0 0.0
        %875 = vmatmul.mubr.f32.gmra.mrb[0].mxu0 %v389
        %v876 = vpop.f32.mrb[0].mxu0
        %v877 = vadd.f32 0.0, %v876
        %v878 = vpop.f32.mrb[0].mxu0
        %879 = vmatprep.mubr.f32.mxu0 0.0
        %880 = vmatmul.mubr.f32.gmra.mrb[0].mxu0 %v390
        %v881 = vpop.f32.mrb[0].mxu0
        %v882 = vadd.f32 0.0, %v881
        %v883 = vpop.f32.mrb[0].mxu0
        %884 = vmatprep.mubr.f32.mxu0 0.0
        %885 = vmatmul.mubr.f32.gmra.mrb[0].mxu0 %v391
        %v886 = vpop.f32.mrb[0].mxu0
        %v887 = vadd.f32 0.0, %v886
        %v888 = vpop.f32.mrb[0].mxu0
        %889 = vmatprep.mubr.f32.mxu0 0.0
        %890 = vmatmul.mubr.f32.gmra.mrb[0].mxu0 %v392
        %v891 = vpop.f32.mrb[0].mxu0
        %v892 = vadd.f32 0.0, %v891
        %v893 = vpop.f32.mrb[0].mxu0
        %894 = vmatprep.mubr.f32.mxu0 0.0
        %895 = vmatmul.mubr.f32.gmra.mrb[0].mxu0 %v393
        %v896 = vpop.f32.mrb[0].mxu0
        %v897 = vadd.f32 0.0, %v896
        %v898 = vpop.f32.mrb[0].mxu0
        %899 = vmatprep.mubr.f32.mxu0 0.0
        %900 = vmatmul.mubr.f32.gmra.mrb[0].mxu0 %v394
        %v901 = vpop.f32.mrb[0].mxu0
        %v902 = vadd.f32 0.0, %v901
        %v903 = vpop.f32.mrb[0].mxu0
        %904 = vmatprep.mubr.f32.mxu0 0.0
        %905 = vmatmul.mubr.f32.gmra.mrb[0].mxu0 %v395
        %v906 = vpop.f32.mrb[0].mxu0
        %v907 = vadd.f32 0.0, %v906
        %v908 = vpop.f32.mrb[0].mxu0
        %909 = vmatprep.mubr.f32.mxu0 0.0
        %910 = vmatmul.mubr.f32.gmra.mrb[0].mxu0 %v396
        %v911 = vpop.f32.mrb[0].mxu0
        %v912 = vadd.f32 0.0, %v911
        %v913 = vpop.f32.mrb[0].mxu0
        %914 = vdwg.mxu0
        %v916 = vsel %vm559, %v837, 0
        %v919 = vsel %vm559, %v842, 0
        %v922 = vsel %vm559, %v847, 0
        %v925 = vsel %vm559, %v852, 0
        %v928 = vsel %vm559, %v857, 0
        %v931 = vsel %vm559, %v862, 0
        %v934 = vsel %vm559, %v867, 0
        %v937 = vsel %vm559, %v872, 0
        %v940 = vsel %vm559, %v877, 0
        %v943 = vsel %vm559, %v882, 0
        %v946 = vsel %vm559, %v887, 0
        %v949 = vsel %vm559, %v892, 0
        %v952 = vsel %vm559, %v897, 0
        %v955 = vsel %vm559, %v902, 0
        %v958 = vsel %vm559, %v907, 0
        %v961 = vsel %vm559, %v912, 0
        %963 = vmatprep.subr.mxu0 0.0
        %964 = vmatpush1.msra.mxu0 %v769
        %965 = vmatprep.subr.mxu0 0.0
        %966 = vmatpush1.msra.mxu0 0.0
        %967 = vmatprep.subr.mxu0 0.0
        %968 = vmatpush1.msra.mxu0 0.0
        %969 = vmatprep.subr.mxu0 0.0
        %970 = vmatpush1.msra.mxu0 0.0
        %971 = vmatprep.subr.mxu0 0.0
        %972 = vmatpush1.msra.mxu0 0.0
        %973 = vmatprep.subr.mxu0 0.0
        %974 = vmatpush1.msra.mxu0 0.0
        %975 = vmatprep.subr.mxu0 0.0
        %976 = vmatpush1.msra.mxu0 0.0
        %977 = vmatprep.subr.mxu0 0.0
        %978 = vmatpush1.msra.mxu0 0.0
        %979 = vmatprep.subr.mxu0 0.0
        %980 = vmatpush1.msra.mxu0 0.0
        %981 = vmatprep.subr.mxu0 0.0
        %982 = vmatpush1.msra.mxu0 0.0
        %983 = vmatprep.subr.mxu0 0.0
        %984 = vmatpush1.msra.mxu0 0.0
        %985 = vmatprep.subr.mxu0 0.0
        %986 = vmatpush1.msra.mxu0 0.0
        %987 = vmatprep.subr.mxu0 0.0
        %988 = vmatpush1.msra.mxu0 0.0
        %989 = vmatprep.subr.mxu0 0.0
        %990 = vmatpush1.msra.mxu0 0.0
        %991 = vmatprep.subr.mxu0 0.0
        %992 = vmatpush1.msra.mxu0 0.0
        %993 = vmatprep.subr.mxu0 0.0
        %994 = vmatpush1.msra.mxu0 0.0
        %995 = vmatprep.subr.mxu0 0.0
        %996 = vmatpush1.msra.mxu0 0.0
        %997 = vmatprep.subr.mxu0 0.0
        %998 = vmatpush1.msra.mxu0 0.0
        %999 = vmatprep.subr.mxu0 0.0
        %1000 = vmatpush1.msra.mxu0 0.0
        %1001 = vmatprep.subr.mxu0 0.0
        %1002 = vmatpush1.msra.mxu0 0.0
        %1003 = vmatprep.subr.mxu0 0.0
        %1004 = vmatpush1.msra.mxu0 0.0
        %1005 = vmatprep.subr.mxu0 0.0
        %1006 = vmatpush1.msra.mxu0 0.0
        %1007 = vmatprep.subr.mxu0 0.0
        %1008 = vmatpush1.msra.mxu0 0.0
        %1009 = vmatprep.subr.mxu0 0.0
        %1010 = vmatpush1.msra.mxu0 0.0
        %1011 = vmatprep.subr.mxu0 0.0
        %1012 = vmatpush1.msra.mxu0 0.0
        %1013 = vmatprep.subr.mxu0 0.0
        %1014 = vmatpush1.msra.mxu0 0.0
        %1015 = vmatprep.subr.mxu0 0.0
        %1016 = vmatpush1.msra.mxu0 0.0
        %1017 = vmatprep.subr.mxu0 0.0
        %1018 = vmatpush1.msra.mxu0 0.0
        %1019 = vmatprep.subr.mxu0 0.0
        %1020 = vmatpush1.msra.mxu0 0.0
        %1021 = vmatprep.subr.mxu0 0.0
        %1022 = vmatpush1.msra.mxu0 0.0
        %1023 = vmatprep.subr.mxu0 0.0
        %1024 = vmatpush1.msra.mxu0 0.0
        %1025 = vmatprep.subr.mxu0 0.0
        %1026 = vmatpush1.msra.mxu0 0.0
        %1027 = vmatprep.mubr.f32.mxu0 0.0
        %1028 = vmatmul.mubr.f32.gmra.mrb[0].mxu0 %v916
        %v1029 = vpop.f32.mrb[0].mxu0
        %v1030 = vadd.f32 0.0, %v1029
        %v1031 = vpop.f32.mrb[0].mxu0
        %1032 = vmatprep.mubr.f32.mxu0 0.0
        %1033 = vmatmul.mubr.f32.gmra.mrb[0].mxu0 %v919
        %v1034 = vpop.f32.mrb[0].mxu0
        %v1035 = vadd.f32 0.0, %v1034
        %v1036 = vpop.f32.mrb[0].mxu0
        %1037 = vmatprep.mubr.f32.mxu0 0.0
        %1038 = vmatmul.mubr.f32.gmra.mrb[0].mxu0 %v922
        %v1039 = vpop.f32.mrb[0].mxu0
        %v1040 = vadd.f32 0.0, %v1039
        %v1041 = vpop.f32.mrb[0].mxu0
        %1042 = vmatprep.mubr.f32.mxu0 0.0
        %1043 = vmatmul.mubr.f32.gmra.mrb[0].mxu0 %v925
        %v1044 = vpop.f32.mrb[0].mxu0
        %v1045 = vadd.f32 0.0, %v1044
        %v1046 = vpop.f32.mrb[0].mxu0
        %1047 = vmatprep.mubr.f32.mxu0 0.0
        %1048 = vmatmul.mubr.f32.gmra.mrb[0].mxu0 %v928
        %v1049 = vpop.f32.mrb[0].mxu0
        %v1050 = vadd.f32 0.0, %v1049
        %v1051 = vpop.f32.mrb[0].mxu0
        %1052 = vmatprep.mubr.f32.mxu0 0.0
        %1053 = vmatmul.mubr.f32.gmra.mrb[0].mxu0 %v931
        %v1054 = vpop.f32.mrb[0].mxu0
        %v1055 = vadd.f32 0.0, %v1054
        %v1056 = vpop.f32.mrb[0].mxu0
        %1057 = vmatprep.mubr.f32.mxu0 0.0
        %1058 = vmatmul.mubr.f32.gmra.mrb[0].mxu0 %v934
        %v1059 = vpop.f32.mrb[0].mxu0
        %v1060 = vadd.f32 0.0, %v1059
        %v1061 = vpop.f32.mrb[0].mxu0
        %1062 = vmatprep.mubr.f32.mxu0 0.0
        %1063 = vmatmul.mubr.f32.gmra.mrb[0].mxu0 %v937
        %v1064 = vpop.f32.mrb[0].mxu0
        %v1065 = vadd.f32 0.0, %v1064
        %v1066 = vpop.f32.mrb[0].mxu0
        %1067 = vmatprep.mubr.f32.mxu0 0.0
        %1068 = vmatmul.mubr.f32.gmra.mrb[0].mxu0 %v940
        %v1069 = vpop.f32.mrb[0].mxu0
        %v1070 = vadd.f32 0.0, %v1069
        %v1071 = vpop.f32.mrb[0].mxu0
        %1072 = vmatprep.mubr.f32.mxu0 0.0
        %1073 = vmatmul.mubr.f32.gmra.mrb[0].mxu0 %v943
        %v1074 = vpop.f32.mrb[0].mxu0
        %v1075 = vadd.f32 0.0, %v1074
        %v1076 = vpop.f32.mrb[0].mxu0
        %1077 = vmatprep.mubr.f32.mxu0 0.0
        %1078 = vmatmul.mubr.f32.gmra.mrb[0].mxu0 %v946
        %v1079 = vpop.f32.mrb[0].mxu0
        %v1080 = vadd.f32 0.0, %v1079
        %v1081 = vpop.f32.mrb[0].mxu0
        %1082 = vmatprep.mubr.f32.mxu0 0.0
        %1083 = vmatmul.mubr.f32.gmra.mrb[0].mxu0 %v949
        %v1084 = vpop.f32.mrb[0].mxu0
        %v1085 = vadd.f32 0.0, %v1084
        %v1086 = vpop.f32.mrb[0].mxu0
        %1087 = vmatprep.mubr.f32.mxu0 0.0
        %1088 = vmatmul.mubr.f32.gmra.mrb[0].mxu0 %v952
        %v1089 = vpop.f32.mrb[0].mxu0
        %v1090 = vadd.f32 0.0, %v1089
        %v1091 = vpop.f32.mrb[0].mxu0
        %1092 = vmatprep.mubr.f32.mxu0 0.0
        %1093 = vmatmul.mubr.f32.gmra.mrb[0].mxu0 %v955
        %v1094 = vpop.f32.mrb[0].mxu0
        %v1095 = vadd.f32 0.0, %v1094
        %v1096 = vpop.f32.mrb[0].mxu0
        %1097 = vmatprep.mubr.f32.mxu0 0.0
        %1098 = vmatmul.mubr.f32.gmra.mrb[0].mxu0 %v958
        %v1099 = vpop.f32.mrb[0].mxu0
        %v1100 = vadd.f32 0.0, %v1099
        %v1101 = vpop.f32.mrb[0].mxu0
        %1102 = vmatprep.mubr.f32.mxu0 0.0
        %1103 = vmatmul.mubr.f32.gmra.mrb[0].mxu0 %v961
        %v1104 = vpop.f32.mrb[0].mxu0
        %v1105 = vadd.f32 0.0, %v1104
        %v1106 = vpop.f32.mrb[0].mxu0
        %1107 = vdwg.mxu0
        %v1108 = vmax.f32 %v1030, 0.0
        %v1109 = vmax.f32 %v1035, 0.0
        %v1110 = vmax.f32 %v1040, 0.0
        %v1111 = vmax.f32 %v1045, 0.0
        %v1112 = vmax.f32 %v1050, 0.0
        %v1113 = vmax.f32 %v1055, 0.0
        %v1114 = vmax.f32 %v1060, 0.0
        %v1115 = vmax.f32 %v1065, 0.0
        %v1116 = vmax.f32 %v1070, 0.0
        %v1117 = vmax.f32 %v1075, 0.0
        %v1118 = vmax.f32 %v1080, 0.0
        %v1119 = vmax.f32 %v1085, 0.0
        %v1120 = vmax.f32 %v1090, 0.0
        %v1121 = vmax.f32 %v1095, 0.0
        %v1122 = vmax.f32 %v1100, 0.0
        %v1123 = vmax.f32 %v1105, 0.0
        %v1124 = vld [vmem:[%s4] sm:$0xf]
        %1125 = vmatprep.subr.mxu0 0.0
        %1126 = vmatpush1.msra.mxu0 %v1108
        %1127 = vmatprep.subr.mxu0 0.0
        %1128 = vmatpush1.msra.mxu0 %v1109
        %1129 = vmatprep.subr.mxu0 0.0
        %1130 = vmatpush1.msra.mxu0 %v1110
        %1131 = vmatprep.subr.mxu0 0.0
        %1132 = vmatpush1.msra.mxu0 %v1111
        %1133 = vmatprep.subr.mxu0 0.0
        %1134 = vmatpush1.msra.mxu0 %v1112
        %1135 = vmatprep.subr.mxu0 0.0
        %1136 = vmatpush1.msra.mxu0 %v1113
        %1137 = vmatprep.subr.mxu0 0.0
        %1138 = vmatpush1.msra.mxu0 %v1114
        %1139 = vmatprep.subr.mxu0 0.0
        %1140 = vmatpush1.msra.mxu0 %v1115
        %1141 = vmatprep.subr.mxu0 0.0
        %1142 = vmatpush1.msra.mxu0 %v1116
        %1143 = vmatprep.subr.mxu0 0.0
        %1144 = vmatpush1.msra.mxu0 %v1117
        %1145 = vmatprep.subr.mxu0 0.0
        %1146 = vmatpush1.msra.mxu0 %v1118
        %1147 = vmatprep.subr.mxu0 0.0
        %1148 = vmatpush1.msra.mxu0 %v1119
        %1149 = vmatprep.subr.mxu0 0.0
        %1150 = vmatpush1.msra.mxu0 %v1120
        %1151 = vmatprep.subr.mxu0 0.0
        %1152 = vmatpush1.msra.mxu0 %v1121
        %1153 = vmatprep.subr.mxu0 0.0
        %1154 = vmatpush1.msra.mxu0 %v1122
        %1155 = vmatprep.subr.mxu0 0.0
        %1156 = vmatpush1.msra.mxu0 %v1123
        %1157 = vmatprep.subr.mxu0 0.0
        %1158 = vmatpush1.msra.mxu0 0.0
        %1159 = vmatprep.subr.mxu0 0.0
        %1160 = vmatpush1.msra.mxu0 0.0
        %1161 = vmatprep.subr.mxu0 0.0
        %1162 = vmatpush1.msra.mxu0 0.0
        %1163 = vmatprep.subr.mxu0 0.0
        %1164 = vmatpush1.msra.mxu0 0.0
        %1165 = vmatprep.subr.mxu0 0.0
        %1166 = vmatpush1.msra.mxu0 0.0
        %1167 = vmatprep.subr.mxu0 0.0
        %1168 = vmatpush1.msra.mxu0 0.0
        %1169 = vmatprep.subr.mxu0 0.0
        %1170 = vmatpush1.msra.mxu0 0.0
        %1171 = vmatprep.subr.mxu0 0.0
        %1172 = vmatpush1.msra.mxu0 0.0
        %1173 = vmatprep.subr.mxu0 0.0
        %1174 = vmatpush1.msra.mxu0 0.0
        %1175 = vmatprep.subr.mxu0 0.0
        %1176 = vmatpush1.msra.mxu0 0.0
        %1177 = vmatprep.subr.mxu0 0.0
        %1178 = vmatpush1.msra.mxu0 0.0
        %1179 = vmatprep.subr.mxu0 0.0
        %1180 = vmatpush1.msra.mxu0 0.0
        %1181 = vmatprep.subr.mxu0 0.0
        %1182 = vmatpush1.msra.mxu0 0.0
        %1183 = vmatprep.subr.mxu0 0.0
        %1184 = vmatpush1.msra.mxu0 0.0
        %1185 = vmatprep.subr.mxu0 0.0
        %1186 = vmatpush1.msra.mxu0 0.0
        %1187 = vmatprep.subr.mxu0 0.0
        %1188 = vmatpush1.msra.mxu0 0.0
        %1189 = vmatprep.mubr.f32.mxu0 0.0
        %1190 = vmatmul.mubr.f32.gmra.mrb[0].mxu0 %v381
        %v1191 = vpop.f32.mrb[0].mxu0
        %v1192 = vadd.f32 0.0, %v1191
        %v1193 = vpop.f32.mrb[0].mxu0
        %1194 = vmatprep.mubr.f32.mxu0 0.0
        %1195 = vmatmul.mubr.f32.gmra.mrb[0].mxu0 %v382
        %v1196 = vpop.f32.mrb[0].mxu0
        %v1197 = vadd.f32 0.0, %v1196
        %v1198 = vpop.f32.mrb[0].mxu0
        %1199 = vmatprep.mubr.f32.mxu0 0.0
        %1200 = vmatmul.mubr.f32.gmra.mrb[0].mxu0 %v383
        %v1201 = vpop.f32.mrb[0].mxu0
        %v1202 = vadd.f32 0.0, %v1201
        %v1203 = vpop.f32.mrb[0].mxu0
        %1204 = vmatprep.mubr.f32.mxu0 0.0
        %1205 = vmatmul.mubr.f32.gmra.mrb[0].mxu0 %v384
        %v1206 = vpop.f32.mrb[0].mxu0
        %v1207 = vadd.f32 0.0, %v1206
        %v1208 = vpop.f32.mrb[0].mxu0
        %1209 = vmatprep.mubr.f32.mxu0 0.0
        %1210 = vmatmul.mubr.f32.gmra.mrb[0].mxu0 %v385
        %v1211 = vpop.f32.mrb[0].mxu0
        %v1212 = vadd.f32 0.0, %v1211
        %v1213 = vpop.f32.mrb[0].mxu0
        %1214 = vmatprep.mubr.f32.mxu0 0.0
        %1215 = vmatmul.mubr.f32.gmra.mrb[0].mxu0 %v386
        %v1216 = vpop.f32.mrb[0].mxu0
        %v1217 = vadd.f32 0.0, %v1216
        %v1218 = vpop.f32.mrb[0].mxu0
        %1219 = vmatprep.mubr.f32.mxu0 0.0
        %1220 = vmatmul.mubr.f32.gmra.mrb[0].mxu0 %v387
        %v1221 = vpop.f32.mrb[0].mxu0
        %v1222 = vadd.f32 0.0, %v1221
        %v1223 = vpop.f32.mrb[0].mxu0
        %1224 = vmatprep.mubr.f32.mxu0 0.0
        %1225 = vmatmul.mubr.f32.gmra.mrb[0].mxu0 %v388
        %v1226 = vpop.f32.mrb[0].mxu0
        %v1227 = vadd.f32 0.0, %v1226
        %v1228 = vpop.f32.mrb[0].mxu0
        %1229 = vmatprep.mubr.f32.mxu0 0.0
        %1230 = vmatmul.mubr.f32.gmra.mrb[0].mxu0 %v389
        %v1231 = vpop.f32.mrb[0].mxu0
        %v1232 = vadd.f32 0.0, %v1231
        %v1233 = vpop.f32.mrb[0].mxu0
        %1234 = vmatprep.mubr.f32.mxu0 0.0
        %1235 = vmatmul.mubr.f32.gmra.mrb[0].mxu0 %v390
        %v1236 = vpop.f32.mrb[0].mxu0
        %v1237 = vadd.f32 0.0, %v1236
        %v1238 = vpop.f32.mrb[0].mxu0
        %1239 = vmatprep.mubr.f32.mxu0 0.0
        %1240 = vmatmul.mubr.f32.gmra.mrb[0].mxu0 %v391
        %v1241 = vpop.f32.mrb[0].mxu0
        %v1242 = vadd.f32 0.0, %v1241
        %v1243 = vpop.f32.mrb[0].mxu0
        %1244 = vmatprep.mubr.f32.mxu0 0.0
        %1245 = vmatmul.mubr.f32.gmra.mrb[0].mxu0 %v392
        %v1246 = vpop.f32.mrb[0].mxu0
        %v1247 = vadd.f32 0.0, %v1246
        %v1248 = vpop.f32.mrb[0].mxu0
        %1249 = vmatprep.mubr.f32.mxu0 0.0
        %1250 = vmatmul.mubr.f32.gmra.mrb[0].mxu0 %v393
        %v1251 = vpop.f32.mrb[0].mxu0
        %v1252 = vadd.f32 0.0, %v1251
        %v1253 = vpop.f32.mrb[0].mxu0
        %1254 = vmatprep.mubr.f32.mxu0 0.0
        %1255 = vmatmul.mubr.f32.gmra.mrb[0].mxu0 %v394
        %v1256 = vpop.f32.mrb[0].mxu0
        %v1257 = vadd.f32 0.0, %v1256
        %v1258 = vpop.f32.mrb[0].mxu0
        %1259 = vmatprep.mubr.f32.mxu0 0.0
        %1260 = vmatmul.mubr.f32.gmra.mrb[0].mxu0 %v395
        %v1261 = vpop.f32.mrb[0].mxu0
        %v1262 = vadd.f32 0.0, %v1261
        %v1263 = vpop.f32.mrb[0].mxu0
        %1264 = vmatprep.mubr.f32.mxu0 0.0
        %1265 = vmatmul.mubr.f32.gmra.mrb[0].mxu0 %v396
        %v1266 = vpop.f32.mrb[0].mxu0
        %v1267 = vadd.f32 0.0, %v1266
        %v1268 = vpop.f32.mrb[0].mxu0
        %1269 = vdwg.mxu0
        %vm1270 = vcmask 31744
        %v1272 = vsel %vm1270, %v1192, 0
        %v1275 = vsel %vm1270, %v1197, 0
        %v1278 = vsel %vm1270, %v1202, 0
        %v1281 = vsel %vm1270, %v1207, 0
        %v1284 = vsel %vm1270, %v1212, 0
        %v1287 = vsel %vm1270, %v1217, 0
        %v1290 = vsel %vm1270, %v1222, 0
        %v1293 = vsel %vm1270, %v1227, 0
        %v1296 = vsel %vm1270, %v1232, 0
        %v1299 = vsel %vm1270, %v1237, 0
        %v1302 = vsel %vm1270, %v1242, 0
        %v1305 = vsel %vm1270, %v1247, 0
        %v1308 = vsel %vm1270, %v1252, 0
        %v1311 = vsel %vm1270, %v1257, 0
        %v1314 = vsel %vm1270, %v1262, 0
        %v1317 = vsel %vm1270, %v1267, 0
        %vm1319 = vcmask 1043456
        %v1321 = vsel %vm1319, %v1124, 0
        %1323 = vmatprep.subr.mxu0 0.0
        %1324 = vmatpush1.msra.mxu0 %v1321
        %1325 = vmatprep.subr.mxu0 0.0
        %1326 = vmatpush1.msra.mxu0 0.0
        %1327 = vmatprep.subr.mxu0 0.0
        %1328 = vmatpush1.msra.mxu0 0.0
        %1329 = vmatprep.subr.mxu0 0.0
        %1330 = vmatpush1.msra.mxu0 0.0
        %1331 = vmatprep.subr.mxu0 0.0
        %1332 = vmatpush1.msra.mxu0 0.0
        %1333 = vmatprep.subr.mxu0 0.0
        %1334 = vmatpush1.msra.mxu0 0.0
        %1335 = vmatprep.subr.mxu0 0.0
        %1336 = vmatpush1.msra.mxu0 0.0
        %1337 = vmatprep.subr.mxu0 0.0
        %1338 = vmatpush1.msra.mxu0 0.0
        %1339 = vmatprep.subr.mxu0 0.0
        %1340 = vmatpush1.msra.mxu0 0.0
        %1341 = vmatprep.subr.mxu0 0.0
        %1342 = vmatpush1.msra.mxu0 0.0
        %1343 = vmatprep.subr.mxu0 0.0
        %1344 = vmatpush1.msra.mxu0 0.0
        %1345 = vmatprep.subr.mxu0 0.0
        %1346 = vmatpush1.msra.mxu0 0.0
        %1347 = vmatprep.subr.mxu0 0.0
        %1348 = vmatpush1.msra.mxu0 0.0
        %1349 = vmatprep.subr.mxu0 0.0
        %1350 = vmatpush1.msra.mxu0 0.0
        %1351 = vmatprep.subr.mxu0 0.0
        %1352 = vmatpush1.msra.mxu0 0.0
        %1353 = vmatprep.subr.mxu0 0.0
        %1354 = vmatpush1.msra.mxu0 0.0
        %1355 = vmatprep.subr.mxu0 0.0
        %1356 = vmatpush1.msra.mxu0 0.0
        %1357 = vmatprep.subr.mxu0 0.0
        %1358 = vmatpush1.msra.mxu0 0.0
        %1359 = vmatprep.subr.mxu0 0.0
        %1360 = vmatpush1.msra.mxu0 0.0
        %1361 = vmatprep.subr.mxu0 0.0
        %1362 = vmatpush1.msra.mxu0 0.0
        %1363 = vmatprep.subr.mxu0 0.0
        %1364 = vmatpush1.msra.mxu0 0.0
        %1365 = vmatprep.subr.mxu0 0.0
        %1366 = vmatpush1.msra.mxu0 0.0
        %1367 = vmatprep.subr.mxu0 0.0
        %1368 = vmatpush1.msra.mxu0 0.0
        %1369 = vmatprep.subr.mxu0 0.0
        %1370 = vmatpush1.msra.mxu0 0.0
        %1371 = vmatprep.subr.mxu0 0.0
        %1372 = vmatpush1.msra.mxu0 0.0
        %1373 = vmatprep.subr.mxu0 0.0
        %1374 = vmatpush1.msra.mxu0 0.0
        %1375 = vmatprep.subr.mxu0 0.0
        %1376 = vmatpush1.msra.mxu0 0.0
        %1377 = vmatprep.subr.mxu0 0.0
        %1378 = vmatpush1.msra.mxu0 0.0
        %1379 = vmatprep.subr.mxu0 0.0
        %1380 = vmatpush1.msra.mxu0 0.0
        %1381 = vmatprep.subr.mxu0 0.0
        %1382 = vmatpush1.msra.mxu0 0.0
        %1383 = vmatprep.subr.mxu0 0.0
        %1384 = vmatpush1.msra.mxu0 0.0
        %1385 = vmatprep.subr.mxu0 0.0
        %1386 = vmatpush1.msra.mxu0 0.0
        %1387 = vmatprep.mubr.f32.mxu0 0.0
        %1388 = vmatmul.mubr.f32.gmra.mrb[0].mxu0 %v1272
        %v1389 = vpop.f32.mrb[0].mxu0
        %v1390 = vadd.f32 0.0, %v1389
        %v1391 = vpop.f32.mrb[0].mxu0
        %1392 = vmatprep.mubr.f32.mxu0 0.0
        %1393 = vmatmul.mubr.f32.gmra.mrb[0].mxu0 %v1275
        %v1394 = vpop.f32.mrb[0].mxu0
        %v1395 = vadd.f32 0.0, %v1394
        %v1396 = vpop.f32.mrb[0].mxu0
        %1397 = vmatprep.mubr.f32.mxu0 0.0
        %1398 = vmatmul.mubr.f32.gmra.mrb[0].mxu0 %v1278
        %v1399 = vpop.f32.mrb[0].mxu0
        %v1400 = vadd.f32 0.0, %v1399
        %v1401 = vpop.f32.mrb[0].mxu0
        %1402 = vmatprep.mubr.f32.mxu0 0.0
        %1403 = vmatmul.mubr.f32.gmra.mrb[0].mxu0 %v1281
        %v1404 = vpop.f32.mrb[0].mxu0
        %v1405 = vadd.f32 0.0, %v1404
        %v1406 = vpop.f32.mrb[0].mxu0
        %1407 = vmatprep.mubr.f32.mxu0 0.0
        %1408 = vmatmul.mubr.f32.gmra.mrb[0].mxu0 %v1284
        %v1409 = vpop.f32.mrb[0].mxu0
        %v1410 = vadd.f32 0.0, %v1409
        %v1411 = vpop.f32.mrb[0].mxu0
        %1412 = vmatprep.mubr.f32.mxu0 0.0
        %1413 = vmatmul.mubr.f32.gmra.mrb[0].mxu0 %v1287
        %v1414 = vpop.f32.mrb[0].mxu0
        %v1415 = vadd.f32 0.0, %v1414
        %v1416 = vpop.f32.mrb[0].mxu0
        %1417 = vmatprep.mubr.f32.mxu0 0.0
        %1418 = vmatmul.mubr.f32.gmra.mrb[0].mxu0 %v1290
        %v1419 = vpop.f32.mrb[0].mxu0
        %v1420 = vadd.f32 0.0, %v1419
        %v1421 = vpop.f32.mrb[0].mxu0
        %1422 = vmatprep.mubr.f32.mxu0 0.0
        %1423 = vmatmul.mubr.f32.gmra.mrb[0].mxu0 %v1293
        %v1424 = vpop.f32.mrb[0].mxu0
        %v1425 = vadd.f32 0.0, %v1424
        %v1426 = vpop.f32.mrb[0].mxu0
        %1427 = vmatprep.mubr.f32.mxu0 0.0
        %1428 = vmatmul.mubr.f32.gmra.mrb[0].mxu0 %v1296
        %v1429 = vpop.f32.mrb[0].mxu0
        %v1430 = vadd.f32 0.0, %v1429
        %v1431 = vpop.f32.mrb[0].mxu0
        %1432 = vmatprep.mubr.f32.mxu0 0.0
        %1433 = vmatmul.mubr.f32.gmra.mrb[0].mxu0 %v1299
        %v1434 = vpop.f32.mrb[0].mxu0
        %v1435 = vadd.f32 0.0, %v1434
        %v1436 = vpop.f32.mrb[0].mxu0
        %1437 = vmatprep.mubr.f32.mxu0 0.0
        %1438 = vmatmul.mubr.f32.gmra.mrb[0].mxu0 %v1302
        %v1439 = vpop.f32.mrb[0].mxu0
        %v1440 = vadd.f32 0.0, %v1439
        %v1441 = vpop.f32.mrb[0].mxu0
        %1442 = vmatprep.mubr.f32.mxu0 0.0
        %1443 = vmatmul.mubr.f32.gmra.mrb[0].mxu0 %v1305
        %v1444 = vpop.f32.mrb[0].mxu0
        %v1445 = vadd.f32 0.0, %v1444
        %v1446 = vpop.f32.mrb[0].mxu0
        %1447 = vmatprep.mubr.f32.mxu0 0.0
        %1448 = vmatmul.mubr.f32.gmra.mrb[0].mxu0 %v1308
        %v1449 = vpop.f32.mrb[0].mxu0
        %v1450 = vadd.f32 0.0, %v1449
        %v1451 = vpop.f32.mrb[0].mxu0
        %1452 = vmatprep.mubr.f32.mxu0 0.0
        %1453 = vmatmul.mubr.f32.gmra.mrb[0].mxu0 %v1311
        %v1454 = vpop.f32.mrb[0].mxu0
        %v1455 = vadd.f32 0.0, %v1454
        %v1456 = vpop.f32.mrb[0].mxu0
        %1457 = vmatprep.mubr.f32.mxu0 0.0
        %1458 = vmatmul.mubr.f32.gmra.mrb[0].mxu0 %v1314
        %v1459 = vpop.f32.mrb[0].mxu0
        %v1460 = vadd.f32 0.0, %v1459
        %v1461 = vpop.f32.mrb[0].mxu0
        %1462 = vmatprep.mubr.f32.mxu0 0.0
        %1463 = vmatmul.mubr.f32.gmra.mrb[0].mxu0 %v1317
        %v1464 = vpop.f32.mrb[0].mxu0
        %v1465 = vadd.f32 0.0, %v1464
        %v1466 = vpop.f32.mrb[0].mxu0
        %1467 = vdwg.mxu0
        %v1468 = vmax.f32 %v1390, 0.0
        %v1469 = vmax.f32 %v1395, 0.0
        %v1470 = vmax.f32 %v1400, 0.0
        %v1471 = vmax.f32 %v1405, 0.0
        %v1472 = vmax.f32 %v1410, 0.0
        %v1473 = vmax.f32 %v1415, 0.0
        %v1474 = vmax.f32 %v1420, 0.0
        %v1475 = vmax.f32 %v1425, 0.0
        %v1476 = vmax.f32 %v1430, 0.0
        %v1477 = vmax.f32 %v1435, 0.0
        %v1478 = vmax.f32 %v1440, 0.0
        %v1479 = vmax.f32 %v1445, 0.0
        %v1480 = vmax.f32 %v1450, 0.0
        %v1481 = vmax.f32 %v1455, 0.0
        %v1482 = vmax.f32 %v1460, 0.0
        %v1483 = vmax.f32 %v1465, 0.0
        %v1484 = vld [vmem:[%s5] sm:$0xff]
        %v1486 = vsel %vm559, %v1468, 0
        %v1489 = vsel %vm559, %v1469, 0
        %v1492 = vsel %vm559, %v1470, 0
        %v1495 = vsel %vm559, %v1471, 0
        %v1498 = vsel %vm559, %v1472, 0
        %v1501 = vsel %vm559, %v1473, 0
        %v1504 = vsel %vm559, %v1474, 0
        %v1507 = vsel %vm559, %v1475, 0
        %v1510 = vsel %vm559, %v1476, 0
        %v1513 = vsel %vm559, %v1477, 0
        %v1516 = vsel %vm559, %v1478, 0
        %v1519 = vsel %vm559, %v1479, 0
        %v1522 = vsel %vm559, %v1480, 0
        %v1525 = vsel %vm559, %v1481, 0
        %v1528 = vsel %vm559, %v1482, 0
        %v1531 = vsel %vm559, %v1483, 0
        %1533 = vmatprep.subr.mxu0 0.0
        %1534 = vmatpush1.msra.mxu0 %v1484
        %1535 = vmatprep.subr.mxu0 0.0
        %1536 = vmatpush1.msra.mxu0 0.0
        %1537 = vmatprep.subr.mxu0 0.0
        %1538 = vmatpush1.msra.mxu0 0.0
        %1539 = vmatprep.subr.mxu0 0.0
        %1540 = vmatpush1.msra.mxu0 0.0
        %1541 = vmatprep.subr.mxu0 0.0
        %1542 = vmatpush1.msra.mxu0 0.0
        %1543 = vmatprep.subr.mxu0 0.0
        %1544 = vmatpush1.msra.mxu0 0.0
        %1545 = vmatprep.subr.mxu0 0.0
        %1546 = vmatpush1.msra.mxu0 0.0
        %1547 = vmatprep.subr.mxu0 0.0
        %1548 = vmatpush1.msra.mxu0 0.0
        %1549 = vmatprep.subr.mxu0 0.0
        %1550 = vmatpush1.msra.mxu0 0.0
        %1551 = vmatprep.subr.mxu0 0.0
        %1552 = vmatpush1.msra.mxu0 0.0
        %1553 = vmatprep.subr.mxu0 0.0
        %1554 = vmatpush1.msra.mxu0 0.0
        %1555 = vmatprep.subr.mxu0 0.0
        %1556 = vmatpush1.msra.mxu0 0.0
        %1557 = vmatprep.subr.mxu0 0.0
        %1558 = vmatpush1.msra.mxu0 0.0
        %1559 = vmatprep.subr.mxu0 0.0
        %1560 = vmatpush1.msra.mxu0 0.0
        %1561 = vmatprep.subr.mxu0 0.0
        %1562 = vmatpush1.msra.mxu0 0.0
        %1563 = vmatprep.subr.mxu0 0.0
        %1564 = vmatpush1.msra.mxu0 0.0
        %1565 = vmatprep.subr.mxu0 0.0
        %1566 = vmatpush1.msra.mxu0 0.0
        %1567 = vmatprep.subr.mxu0 0.0
        %1568 = vmatpush1.msra.mxu0 0.0
        %1569 = vmatprep.subr.mxu0 0.0
        %1570 = vmatpush1.msra.mxu0 0.0
        %1571 = vmatprep.subr.mxu0 0.0
        %1572 = vmatpush1.msra.mxu0 0.0
        %1573 = vmatprep.subr.mxu0 0.0
        %1574 = vmatpush1.msra.mxu0 0.0
        %1575 = vmatprep.subr.mxu0 0.0
        %1576 = vmatpush1.msra.mxu0 0.0
        %1577 = vmatprep.subr.mxu0 0.0
        %1578 = vmatpush1.msra.mxu0 0.0
        %1579 = vmatprep.subr.mxu0 0.0
        %1580 = vmatpush1.msra.mxu0 0.0
        %1581 = vmatprep.subr.mxu0 0.0
        %1582 = vmatpush1.msra.mxu0 0.0
        %1583 = vmatprep.subr.mxu0 0.0
        %1584 = vmatpush1.msra.mxu0 0.0
        %1585 = vmatprep.subr.mxu0 0.0
        %1586 = vmatpush1.msra.mxu0 0.0
        %1587 = vmatprep.subr.mxu0 0.0
        %1588 = vmatpush1.msra.mxu0 0.0
        %1589 = vmatprep.subr.mxu0 0.0
        %1590 = vmatpush1.msra.mxu0 0.0
        %1591 = vmatprep.subr.mxu0 0.0
        %1592 = vmatpush1.msra.mxu0 0.0
        %1593 = vmatprep.subr.mxu0 0.0
        %1594 = vmatpush1.msra.mxu0 0.0
        %1595 = vmatprep.subr.mxu0 0.0
        %1596 = vmatpush1.msra.mxu0 0.0
        %1597 = vmatprep.mubr.f32.mxu0 0.0
        %1598 = vmatmul.mubr.f32.gmra.mrb[0].mxu0 %v1486
        %v1599 = vpop.f32.mrb[0].mxu0
        %v1600 = vadd.f32 0.0, %v1599
        %v1601 = vpop.f32.mrb[0].mxu0
        %1602 = vmatprep.mubr.f32.mxu0 0.0
        %1603 = vmatmul.mubr.f32.gmra.mrb[0].mxu0 %v1489
        %v1604 = vpop.f32.mrb[0].mxu0
        %v1605 = vadd.f32 0.0, %v1604
        %v1606 = vpop.f32.mrb[0].mxu0
        %1607 = vmatprep.mubr.f32.mxu0 0.0
        %1608 = vmatmul.mubr.f32.gmra.mrb[0].mxu0 %v1492
        %v1609 = vpop.f32.mrb[0].mxu0
        %v1610 = vadd.f32 0.0, %v1609
        %v1611 = vpop.f32.mrb[0].mxu0
        %1612 = vmatprep.mubr.f32.mxu0 0.0
        %1613 = vmatmul.mubr.f32.gmra.mrb[0].mxu0 %v1495
        %v1614 = vpop.f32.mrb[0].mxu0
        %v1615 = vadd.f32 0.0, %v1614
        %v1616 = vpop.f32.mrb[0].mxu0
        %1617 = vmatprep.mubr.f32.mxu0 0.0
        %1618 = vmatmul.mubr.f32.gmra.mrb[0].mxu0 %v1498
        %v1619 = vpop.f32.mrb[0].mxu0
        %v1620 = vadd.f32 0.0, %v1619
        %v1621 = vpop.f32.mrb[0].mxu0
        %1622 = vmatprep.mubr.f32.mxu0 0.0
        %1623 = vmatmul.mubr.f32.gmra.mrb[0].mxu0 %v1501
        %v1624 = vpop.f32.mrb[0].mxu0
        %v1625 = vadd.f32 0.0, %v1624
        %v1626 = vpop.f32.mrb[0].mxu0
        %1627 = vmatprep.mubr.f32.mxu0 0.0
        %1628 = vmatmul.mubr.f32.gmra.mrb[0].mxu0 %v1504
        %v1629 = vpop.f32.mrb[0].mxu0
        %v1630 = vadd.f32 0.0, %v1629
        %v1631 = vpop.f32.mrb[0].mxu0
        %1632 = vmatprep.mubr.f32.mxu0 0.0
        %1633 = vmatmul.mubr.f32.gmra.mrb[0].mxu0 %v1507
        %v1634 = vpop.f32.mrb[0].mxu0
        %v1635 = vadd.f32 0.0, %v1634
        %v1636 = vpop.f32.mrb[0].mxu0
        %1637 = vmatprep.mubr.f32.mxu0 0.0
        %1638 = vmatmul.mubr.f32.gmra.mrb[0].mxu0 %v1510
        %v1639 = vpop.f32.mrb[0].mxu0
        %v1640 = vadd.f32 0.0, %v1639
        %v1641 = vpop.f32.mrb[0].mxu0
        %1642 = vmatprep.mubr.f32.mxu0 0.0
        %1643 = vmatmul.mubr.f32.gmra.mrb[0].mxu0 %v1513
        %v1644 = vpop.f32.mrb[0].mxu0
        %v1645 = vadd.f32 0.0, %v1644
        %v1646 = vpop.f32.mrb[0].mxu0
        %1647 = vmatprep.mubr.f32.mxu0 0.0
        %1648 = vmatmul.mubr.f32.gmra.mrb[0].mxu0 %v1516
        %v1649 = vpop.f32.mrb[0].mxu0
        %v1650 = vadd.f32 0.0, %v1649
        %v1651 = vpop.f32.mrb[0].mxu0
        %1652 = vmatprep.mubr.f32.mxu0 0.0
        %1653 = vmatmul.mubr.f32.gmra.mrb[0].mxu0 %v1519
        %v1654 = vpop.f32.mrb[0].mxu0
        %v1655 = vadd.f32 0.0, %v1654
        %v1656 = vpop.f32.mrb[0].mxu0
        %1657 = vmatprep.mubr.f32.mxu0 0.0
        %1658 = vmatmul.mubr.f32.gmra.mrb[0].mxu0 %v1522
        %v1659 = vpop.f32.mrb[0].mxu0
        %v1660 = vadd.f32 0.0, %v1659
        %v1661 = vpop.f32.mrb[0].mxu0
        %1662 = vmatprep.mubr.f32.mxu0 0.0
        %1663 = vmatmul.mubr.f32.gmra.mrb[0].mxu0 %v1525
        %v1664 = vpop.f32.mrb[0].mxu0
        %v1665 = vadd.f32 0.0, %v1664
        %v1666 = vpop.f32.mrb[0].mxu0
        %1667 = vmatprep.mubr.f32.mxu0 0.0
        %1668 = vmatmul.mubr.f32.gmra.mrb[0].mxu0 %v1528
        %v1669 = vpop.f32.mrb[0].mxu0
        %v1670 = vadd.f32 0.0, %v1669
        %v1671 = vpop.f32.mrb[0].mxu0
        %1672 = vmatprep.mubr.f32.mxu0 0.0
        %1673 = vmatmul.mubr.f32.gmra.mrb[0].mxu0 %v1531
        %v1674 = vpop.f32.mrb[0].mxu0
        %v1675 = vadd.f32 0.0, %v1674
        %v1676 = vpop.f32.mrb[0].mxu0
        %1677 = vdwg.mxu0
        %v1678 = vld [vmem:[%s6] sm:$0xff]
        %v1679 = vld [vmem:[%s6 + $0x8] sm:$0xff]
        %v1680 = vld [vmem:[%s6 + $0x10] sm:$0xff]
        %v1681 = vld [vmem:[%s6 + $0x18] sm:$0xff]
        %v1682 = vld [vmem:[%s6 + $0x20] sm:$0xff]
        %v1683 = vld [vmem:[%s6 + $0x28] sm:$0xff]
        %v1684 = vld [vmem:[%s6 + $0x30] sm:$0xff]
        %v1685 = vld [vmem:[%s6 + $0x38] sm:$0xff]
        %v1686 = vld [vmem:[%s6 + $0x40] sm:$0xff]
        %v1687 = vld [vmem:[%s6 + $0x48] sm:$0xff]
        %v1688 = vld [vmem:[%s6 + $0x50] sm:$0xff]
        %v1689 = vld [vmem:[%s6 + $0x58] sm:$0xff]
        %v1690 = vld [vmem:[%s6 + $0x60] sm:$0xff]
        %v1691 = vld [vmem:[%s6 + $0x68] sm:$0xff]
        %v1692 = vld [vmem:[%s6 + $0x70] sm:$0xff]
        %v1693 = vld [vmem:[%s6 + $0x78] sm:$0xff]
        %v1694 = vmul.f32 %v1600, %v1678
        %v1695 = vmul.f32 %v1605, %v1679
        %v1696 = vmul.f32 %v1610, %v1680
        %v1697 = vmul.f32 %v1615, %v1681
        %v1698 = vmul.f32 %v1620, %v1682
        %v1699 = vmul.f32 %v1625, %v1683
        %v1700 = vmul.f32 %v1630, %v1684
        %v1701 = vmul.f32 %v1635, %v1685
        %v1702 = vmul.f32 %v1640, %v1686
        %v1703 = vmul.f32 %v1645, %v1687
        %v1704 = vmul.f32 %v1650, %v1688
        %v1705 = vmul.f32 %v1655, %v1689
        %v1706 = vmul.f32 %v1660, %v1690
        %v1707 = vmul.f32 %v1665, %v1691
        %v1708 = vmul.f32 %v1670, %v1692
        %v1709 = vmul.f32 %v1675, %v1693
        %v1710 = vld [vmem:[%s7] sm:$0xff]
        %v1711 = vld [vmem:[%s7 + $0x8] sm:$0xff]
        %v1712 = vld [vmem:[%s7 + $0x10] sm:$0xff]
        %v1713 = vld [vmem:[%s7 + $0x18] sm:$0xff]
        %v1714 = vld [vmem:[%s7 + $0x20] sm:$0xff]
        %v1715 = vld [vmem:[%s7 + $0x28] sm:$0xff]
        %v1716 = vld [vmem:[%s7 + $0x30] sm:$0xff]
        %v1717 = vld [vmem:[%s7 + $0x38] sm:$0xff]
        %vm1718 = vcmask 523264
        %v1720 = vsel %vm1718, %v1694, 0
        %v1723 = vsel %vm1718, %v1695, 0
        %v1726 = vsel %vm1718, %v1696, 0
        %v1729 = vsel %vm1718, %v1697, 0
        %v1732 = vsel %vm1718, %v1698, 0
        %v1735 = vsel %vm1718, %v1699, 0
        %v1738 = vsel %vm1718, %v1700, 0
        %v1741 = vsel %vm1718, %v1701, 0
        %v1744 = vsel %vm1718, %v1702, 0
        %v1747 = vsel %vm1718, %v1703, 0
        %v1750 = vsel %vm1718, %v1704, 0
        %v1753 = vsel %vm1718, %v1705, 0
        %v1756 = vsel %vm1718, %v1706, 0
        %v1759 = vsel %vm1718, %v1707, 0
        %v1762 = vsel %vm1718, %v1708, 0
        %v1765 = vsel %vm1718, %v1709, 0
        %1767 = vmatprep.subr.mxu0 0.0
        %1768 = vmatpush1.msra.mxu0 %v1710
        %1769 = vmatprep.subr.mxu0 0.0
        %1770 = vmatpush1.msra.mxu0 %v1711
        %1771 = vmatprep.subr.mxu0 0.0
        %1772 = vmatpush1.msra.mxu0 %v1712
        %1773 = vmatprep.subr.mxu0 0.0
        %1774 = vmatpush1.msra.mxu0 %v1713
        %1775 = vmatprep.subr.mxu0 0.0
        %1776 = vmatpush1.msra.mxu0 %v1714
        %1777 = vmatprep.subr.mxu0 0.0
        %1778 = vmatpush1.msra.mxu0 %v1715
        %1779 = vmatprep.subr.mxu0 0.0
        %1780 = vmatpush1.msra.mxu0 %v1716
        %1781 = vmatprep.subr.mxu0 0.0
        %1782 = vmatpush1.msra.mxu0 %v1717
        %1783 = vmatprep.subr.mxu0 0.0
        %1784 = vmatpush1.msra.mxu0 0.0
        %1785 = vmatprep.subr.mxu0 0.0
        %1786 = vmatpush1.msra.mxu0 0.0
        %1787 = vmatprep.subr.mxu0 0.0
        %1788 = vmatpush1.msra.mxu0 0.0
        %1789 = vmatprep.subr.mxu0 0.0
        %1790 = vmatpush1.msra.mxu0 0.0
        %1791 = vmatprep.subr.mxu0 0.0
        %1792 = vmatpush1.msra.mxu0 0.0
        %1793 = vmatprep.subr.mxu0 0.0
        %1794 = vmatpush1.msra.mxu0 0.0
        %1795 = vmatprep.subr.mxu0 0.0
        %1796 = vmatpush1.msra.mxu0 0.0
        %1797 = vmatprep.subr.mxu0 0.0
        %1798 = vmatpush1.msra.mxu0 0.0
        %1799 = vmatprep.subr.mxu0 0.0
        %1800 = vmatpush1.msra.mxu0 0.0
        %1801 = vmatprep.subr.mxu0 0.0
        %1802 = vmatpush1.msra.mxu0 0.0
        %1803 = vmatprep.subr.mxu0 0.0
        %1804 = vmatpush1.msra.mxu0 0.0
        %1805 = vmatprep.subr.mxu0 0.0
        %1806 = vmatpush1.msra.mxu0 0.0
        %1807 = vmatprep.subr.mxu0 0.0
        %1808 = vmatpush1.msra.mxu0 0.0
        %1809 = vmatprep.subr.mxu0 0.0
        %1810 = vmatpush1.msra.mxu0 0.0
        %1811 = vmatprep.subr.mxu0 0.0
        %1812 = vmatpush1.msra.mxu0 0.0
        %1813 = vmatprep.subr.mxu0 0.0
        %1814 = vmatpush1.msra.mxu0 0.0
        %1815 = vmatprep.subr.mxu0 0.0
        %1816 = vmatpush1.msra.mxu0 0.0
        %1817 = vmatprep.subr.mxu0 0.0
        %1818 = vmatpush1.msra.mxu0 0.0
        %1819 = vmatprep.subr.mxu0 0.0
        %1820 = vmatpush1.msra.mxu0 0.0
        %1821 = vmatprep.subr.mxu0 0.0
        %1822 = vmatpush1.msra.mxu0 0.0
        %1823 = vmatprep.subr.mxu0 0.0
        %1824 = vmatpush1.msra.mxu0 0.0
        %1825 = vmatprep.subr.mxu0 0.0
        %1826 = vmatpush1.msra.mxu0 0.0
        %1827 = vmatprep.subr.mxu0 0.0
        %1828 = vmatpush1.msra.mxu0 0.0
        %1829 = vmatprep.subr.mxu0 0.0
        %1830 = vmatpush1.msra.mxu0 0.0
        %1831 = vmatprep.mubr.f32.mxu0 0.0
        %1832 = vmatmul.mubr.f32.gmra.mrb[0].mxu0 %v1720
        %v1833 = vpop.f32.mrb[0].mxu0
        %v1834 = vadd.f32 0.0, %v1833
        %v1835 = vpop.f32.mrb[0].mxu0
        %1836 = vmatprep.mubr.f32.mxu0 0.0
        %1837 = vmatmul.mubr.f32.gmra.mrb[0].mxu0 %v1723
        %v1838 = vpop.f32.mrb[0].mxu0
        %v1839 = vadd.f32 0.0, %v1838
        %v1840 = vpop.f32.mrb[0].mxu0
        %1841 = vmatprep.mubr.f32.mxu0 0.0
        %1842 = vmatmul.mubr.f32.gmra.mrb[0].mxu0 %v1726
        %v1843 = vpop.f32.mrb[0].mxu0
        %v1844 = vadd.f32 0.0, %v1843
        %v1845 = vpop.f32.mrb[0].mxu0
        %1846 = vmatprep.mubr.f32.mxu0 0.0
        %1847 = vmatmul.mubr.f32.gmra.mrb[0].mxu0 %v1729
        %v1848 = vpop.f32.mrb[0].mxu0
        %v1849 = vadd.f32 0.0, %v1848
        %v1850 = vpop.f32.mrb[0].mxu0
        %1851 = vmatprep.mubr.f32.mxu0 0.0
        %1852 = vmatmul.mubr.f32.gmra.mrb[0].mxu0 %v1732
        %v1853 = vpop.f32.mrb[0].mxu0
        %v1854 = vadd.f32 0.0, %v1853
        %v1855 = vpop.f32.mrb[0].mxu0
        %1856 = vmatprep.mubr.f32.mxu0 0.0
        %1857 = vmatmul.mubr.f32.gmra.mrb[0].mxu0 %v1735
        %v1858 = vpop.f32.mrb[0].mxu0
        %v1859 = vadd.f32 0.0, %v1858
        %v1860 = vpop.f32.mrb[0].mxu0
        %1861 = vmatprep.mubr.f32.mxu0 0.0
        %1862 = vmatmul.mubr.f32.gmra.mrb[0].mxu0 %v1738
        %v1863 = vpop.f32.mrb[0].mxu0
        %v1864 = vadd.f32 0.0, %v1863
        %v1865 = vpop.f32.mrb[0].mxu0
        %1866 = vmatprep.mubr.f32.mxu0 0.0
        %1867 = vmatmul.mubr.f32.gmra.mrb[0].mxu0 %v1741
        %v1868 = vpop.f32.mrb[0].mxu0
        %v1869 = vadd.f32 0.0, %v1868
        %v1870 = vpop.f32.mrb[0].mxu0
        %1871 = vmatprep.mubr.f32.mxu0 0.0
        %1872 = vmatmul.mubr.f32.gmra.mrb[0].mxu0 %v1744
        %v1873 = vpop.f32.mrb[0].mxu0
        %v1874 = vadd.f32 0.0, %v1873
        %v1875 = vpop.f32.mrb[0].mxu0
        %1876 = vmatprep.mubr.f32.mxu0 0.0
        %1877 = vmatmul.mubr.f32.gmra.mrb[0].mxu0 %v1747
        %v1878 = vpop.f32.mrb[0].mxu0
        %v1879 = vadd.f32 0.0, %v1878
        %v1880 = vpop.f32.mrb[0].mxu0
        %1881 = vmatprep.mubr.f32.mxu0 0.0
        %1882 = vmatmul.mubr.f32.gmra.mrb[0].mxu0 %v1750
        %v1883 = vpop.f32.mrb[0].mxu0
        %v1884 = vadd.f32 0.0, %v1883
        %v1885 = vpop.f32.mrb[0].mxu0
        %1886 = vmatprep.mubr.f32.mxu0 0.0
        %1887 = vmatmul.mubr.f32.gmra.mrb[0].mxu0 %v1753
        %v1888 = vpop.f32.mrb[0].mxu0
        %v1889 = vadd.f32 0.0, %v1888
        %v1890 = vpop.f32.mrb[0].mxu0
        %1891 = vmatprep.mubr.f32.mxu0 0.0
        %1892 = vmatmul.mubr.f32.gmra.mrb[0].mxu0 %v1756
        %v1893 = vpop.f32.mrb[0].mxu0
        %v1894 = vadd.f32 0.0, %v1893
        %v1895 = vpop.f32.mrb[0].mxu0
        %1896 = vmatprep.mubr.f32.mxu0 0.0
        %1897 = vmatmul.mubr.f32.gmra.mrb[0].mxu0 %v1759
        %v1898 = vpop.f32.mrb[0].mxu0
        %v1899 = vadd.f32 0.0, %v1898
        %v1900 = vpop.f32.mrb[0].mxu0
        %1901 = vmatprep.mubr.f32.mxu0 0.0
        %1902 = vmatmul.mubr.f32.gmra.mrb[0].mxu0 %v1762
        %v1903 = vpop.f32.mrb[0].mxu0
        %v1904 = vadd.f32 0.0, %v1903
        %v1905 = vpop.f32.mrb[0].mxu0
        %1906 = vmatprep.mubr.f32.mxu0 0.0
        %1907 = vmatmul.mubr.f32.gmra.mrb[0].mxu0 %v1765
        %v1908 = vpop.f32.mrb[0].mxu0
        %v1909 = vadd.f32 0.0, %v1908
        %v1910 = vpop.f32.mrb[0].mxu0
        %1911 = vdwg.mxu0
        %v1912 = vld [vmem:[%s8] sm:$0xff]
        %v1913 = vld [vmem:[%s8 + $0x8] sm:$0xff]
        %v1914 = vld [vmem:[%s9] sm:$0x1]
        %v1916 = vlaneseq
        %v1917 = vshrl.u32 %v1916, 7
        %v1918 = vsub.s32 0, %v1917
        %v1919 = vrot.slane %v1914, %v1918
        %1921 = vmatprep.subr.mxu0 0.0
        %1922 = vmatpush1.msra.mxu0 %v1834
        %1923 = vmatprep.subr.mxu0 0.0
        %1924 = vmatpush1.msra.mxu0 %v1839
        %1925 = vmatprep.subr.mxu0 0.0
        %1926 = vmatpush1.msra.mxu0 %v1844
        %1927 = vmatprep.subr.mxu0 0.0
        %1928 = vmatpush1.msra.mxu0 %v1849
        %1929 = vmatprep.subr.mxu0 0.0
        %1930 = vmatpush1.msra.mxu0 %v1854
        %1931 = vmatprep.subr.mxu0 0.0
        %1932 = vmatpush1.msra.mxu0 %v1859
        %1933 = vmatprep.subr.mxu0 0.0
        %1934 = vmatpush1.msra.mxu0 %v1864
        %1935 = vmatprep.subr.mxu0 0.0
        %1936 = vmatpush1.msra.mxu0 %v1869
        %1937 = vmatprep.subr.mxu0 0.0
        %1938 = vmatpush1.msra.mxu0 %v1874
        %1939 = vmatprep.subr.mxu0 0.0
        %1940 = vmatpush1.msra.mxu0 %v1879
        %1941 = vmatprep.subr.mxu0 0.0
        %1942 = vmatpush1.msra.mxu0 %v1884
        %1943 = vmatprep.subr.mxu0 0.0
        %1944 = vmatpush1.msra.mxu0 %v1889
        %1945 = vmatprep.subr.mxu0 0.0
        %1946 = vmatpush1.msra.mxu0 %v1894
        %1947 = vmatprep.subr.mxu0 0.0
        %1948 = vmatpush1.msra.mxu0 %v1899
        %1949 = vmatprep.subr.mxu0 0.0
        %1950 = vmatpush1.msra.mxu0 %v1904
        %1951 = vmatprep.subr.mxu0 0.0
        %1952 = vmatpush1.msra.mxu0 %v1909
        %1953 = vmatprep.subr.mxu0 0.0
        %1954 = vmatpush1.msra.mxu0 0.0
        %1955 = vmatprep.subr.mxu0 0.0
        %1956 = vmatpush1.msra.mxu0 0.0
        %1957 = vmatprep.subr.mxu0 0.0
        %1958 = vmatpush1.msra.mxu0 0.0
        %1959 = vmatprep.subr.mxu0 0.0
        %1960 = vmatpush1.msra.mxu0 0.0
        %1961 = vmatprep.subr.mxu0 0.0
        %1962 = vmatpush1.msra.mxu0 0.0
        %1963 = vmatprep.subr.mxu0 0.0
        %1964 = vmatpush1.msra.mxu0 0.0
        %1965 = vmatprep.subr.mxu0 0.0
        %1966 = vmatpush1.msra.mxu0 0.0
        %1967 = vmatprep.subr.mxu0 0.0
        %1968 = vmatpush1.msra.mxu0 0.0
        %1969 = vmatprep.subr.mxu0 0.0
        %1970 = vmatpush1.msra.mxu0 0.0
        %1971 = vmatprep.subr.mxu0 0.0
        %1972 = vmatpush1.msra.mxu0 0.0
        %1973 = vmatprep.subr.mxu0 0.0
        %1974 = vmatpush1.msra.mxu0 0.0
        %1975 = vmatprep.subr.mxu0 0.0
        %1976 = vmatpush1.msra.mxu0 0.0
        %1977 = vmatprep.subr.mxu0 0.0
        %1978 = vmatpush1.msra.mxu0 0.0
        %1979 = vmatprep.subr.mxu0 0.0
        %1980 = vmatpush1.msra.mxu0 0.0
        %1981 = vmatprep.subr.mxu0 0.0
        %1982 = vmatpush1.msra.mxu0 0.0
        %1983 = vmatprep.subr.mxu0 0.0
        %1984 = vmatpush1.msra.mxu0 0.0
        %1985 = vmatprep.mubr.f32.mxu0 0.0
        %1986 = vmatmul.mubr.f32.gmra.mrb[0].mxu0 %v1912
        %v1987 = vpop.f32.mrb[0].mxu0
        %v1988 = vadd.f32 %v1919, %v1987
        %v1989 = vpop.f32.mrb[0].mxu0
        %1990 = vmatprep.mubr.f32.mxu0 0.0
        %1991 = vmatmul.mubr.f32.gmra.mrb[0].mxu0 %v1913
        %v1992 = vpop.f32.mrb[0].mxu0
        %v1993 = vadd.f32 %v1919, %v1992
        %v1994 = vpop.f32.mrb[0].mxu0
        %1995 = vdwg.mxu0
        %v1996 = vmul.f32 %v1988, %v1988
        %v1997 = vmul.f32 %v1993, %v1993
        %1998 = vadd.xlane.f32.xlu0 %v1996
        %v1999 = vpop.xlane.xlu0 %1998
        %2000 = vadd.xlane.f32.xlu0 %v1997
        %v2001 = vpop.xlane.xlu0 %2000
        %v2002 = vrsqrt.pop %v1999
        %v2003 = vmul.f32 %v1999, %v2002
        %vm2004 = vcmp.eq.f32.partialorder %v1999, inf
        %v2005 = vsel %vm2004, %v1999, %v2003
        %vm2006 = vcmp.eq.f32.partialorder %v1999, 0.0
        %v2007 = vand.u32 %v1999, 2147483648
        %v2008 = vsel %vm2006, %v2007, %v2005
        %v2009 = vrsqrt.pop %v2001
        %v2010 = vmul.f32 %v2001, %v2009
        %vm2011 = vcmp.eq.f32.partialorder %v2001, inf
        %v2012 = vsel %vm2011, %v2001, %v2010
        %vm2013 = vcmp.eq.f32.partialorder %v2001, 0.0
        %v2014 = vand.u32 %v2001, 2147483648
        %v2015 = vsel %vm2013, %v2014, %v2012
        %v2016 = vmax.f32 %v2008, 1e-12
        %v2017 = vmax.f32 %v2015, 1e-12
        %v2018 = vrcp.pop %v2016
        %v2019 = vmul.f32 %v1988, %v2018
        %v2020 = vrcp.pop %v2017
        %v2021 = vmul.f32 %v1993, %v2020
        %2022 = vst [vmem:[%s368] sm:$0xff] %v2019
        %2023 = vst [vmem:[%s368 + $0x8] sm:$0xff] %v2021
        %s2024 = sand.u32 %s252, 1
        %s2025 = scalar_lea.sflag [#allocation3], %s2024
        %s2026 = sand.u32 %s252, 1
        %s2027 = smul.addr %s2026, 16
        %s2028 = scalar_lea.vmem [#allocation2], %s2027
        // Predicated region
        $region61: #{tpu_custom_call.1} parent=59 // pred_check
          %p2029 = pneg %p262
        $region62: #{tpu_custom_call.1} parent=59 // pred_check_branch
          %2031 = sbr.rel (%p2029) target = $region64
        $region63: #{tpu_custom_call.1} parent=59 // pred_region
          %s2032 = smul.u32 2, %s24
          %s2034 = ssub.s32 256, 256
          %2035 = vsyncadd %s2025, %s2034
          %s2036 = smul.addr %s2032, 128
          %s2037 = scalar_lea.hbm %s10, %s2036
          %s2038 = sshll.u32 %s2028, 4
          %s2039 = int_to_ptr.vmem [resolvable:$true] %s2038
          %2044 = dma.vmem_to_hbm [thread:$0]  %s2039, 256, %s2037, %s2025, 128, 128, 8
        $region64: #{tpu_custom_call.1} parent=59 // pred_fallthru
          _
      $region60: #{tpu_custom_call.1} parent=5 // pred_fallthru
        _
      %p2045 = scmp.le.s32.totalorder 2, %s19
      // Predicated region
      $region65: #{tpu_custom_call.1} parent=5 // pred_check
        %p2046 = pneg %p2045
      $region66: #{tpu_custom_call.1} parent=5 // pred_check_branch
        %2048 = sbr.rel (%p2046) target = $region68
      $region67: #{tpu_custom_call.1} parent=5 // pred_region
        %s2049 = ssub.s32 %s19, 2
        // Predicated region
        $region69: #{tpu_custom_call.1} parent=67 // pred_check
          %p2050 = pneg %p268
        $region70: #{tpu_custom_call.1} parent=67 // pred_check_branch
          %2052 = sbr.rel (%p2050) target = $region72
        $region71: #{tpu_custom_call.1} parent=67 // pred_region
          %s2053 = sand.u32 %s253, 1
          %s2054 = scalar_lea.sflag [#allocation3], %s2053
          %s2055 = sand.u32 %s253, 1
          %s2056 = smul.addr %s2055, 16
          %s2057 = scalar_lea.vmem [#allocation2], %s2056
          %2058 = dma.done %s2054, 256
        $region72: #{tpu_custom_call.1} parent=67 // pred_fallthru
          _
      $region68: #{tpu_custom_call.1} parent=5 // pred_fallthru
        _
    $region6: #{tpu_custom_call.1} parent=1 // loop_footer
      %s23 = sadd.s32 1, %s19
    $region7: #{tpu_custom_call.1} parent=1 // loop_footer_branch
      %18 = sbr.rel target = $region3
    $region8: #{tpu_custom_call.1} parent=1 // loop_exit
      _
    %2059 = vsyncpa [#allocation3], 1
    %s2060 = scalar_lea.sflag [#allocation3], 1
    %2061 = vsyncpa %s2060, 1

</llo_original>
